<compile_context>
chip_gen: v6e
topology: v6e:2x2x1
jax: 0.10.0
libtpu: 0.0.40
codegen_flags: <defaults>
</compile_context>

<pallas_src>
import jax
import jax.numpy as jnp
from jax.experimental import pallas as pl
from jax.experimental.pallas import tpu as pltpu

VOCAB = 5398
VOCAB_PAD = 5400          # pad table rows to a multiple of 8 (sublane)
EMB = 64
HID = 32
H2 = 2 * HID              # bidirectional hidden width (64)
GATES_PAD = 256           # i|g|o packed on lanes (192) padded to 256
NCLS = 876
NCLS_PAD = 896            # next multiple of 128


def _g2pm_kernel(ids_ref, tgt_ref,                    # SMEM ids, VMEM (P_pad,1) targets
                 emb_hbm,                             # HBM-resident embedding table
                 wg_ref, bg_ref, w1_ref, b1_ref, w2_ref, b2_ref,
                 out_ref,
                 e_scr, sem):
    L_pad = e_scr.shape[0]
    P_pad = out_ref.shape[1]

    # ---- embedding gather: per-row DMAs straight from the HBM table ----
    # ids live in SMEM; each copy moves one (1, 64) f32 row.  Start all, then
    # wait all so the row fetches overlap each other and the weight DMAs.
    copies = [
        pltpu.make_async_copy(emb_hbm.at[pl.ds(ids_ref[l], 1), :],
                              e_scr.at[pl.ds(l, 1), :],
                              sem.at[l])
        for l in range(L_pad)
    ]
    for cp in copies:
        cp.start()
    for cp in copies:
        cp.wait()
    e = e_scr[...]                                    # (L_pad, 64)

    # ---- bidirectional single-step LSTM, h0 = c0 = 0 ----
    # One fused, lane-dense gate matmul.  Lanes [0:64]  = input gate (fwd|bwd),
    # [64:128] = cell candidate, [128:192] = output gate, [192:256] = padding.
    # The forget gate is irrelevant because c0 == 0.  Fwd/bwd halves match
    # torch's concat order for bidirectional outputs.
    gates = jnp.dot(e, wg_ref[...], preferred_element_type=jnp.float32) + bg_ref[...]
    i_g = jax.nn.sigmoid(gates[:, 0:H2])
    g_g = jnp.tanh(gates[:, H2:2 * H2])
    o_g = jax.nn.sigmoid(gates[:, 2 * H2:3 * H2])
    h = o_g * jnp.tanh(i_g * g_g)                     # (L_pad, 64)

    # ---- gather hidden states at polyphone positions via one-hot matmul ----
    col = jax.lax.broadcasted_iota(jnp.int32, (P_pad, L_pad), 1)
    onehot = (col == tgt_ref[...]).astype(jnp.float32)           # (P_pad, L_pad)
    sel = jnp.dot(onehot, h, preferred_element_type=jnp.float32)  # (P_pad, 64)

    # ---- logit MLP: Linear(64,32) -> ReLU -> Linear(32,876) ----
    z = jnp.maximum(
        jnp.dot(sel, w1_ref[...], preferred_element_type=jnp.float32) + b1_ref[...],
        0.0)
    logits = jnp.dot(z, w2_ref[...], preferred_element_type=jnp.float32) + b2_ref[...]

    # ---- argmax over classes (first occurrence, like torch/jnp argmax) ----
    # Padded classes carry a -1e30 bias so they never win.
    cls = jax.lax.broadcasted_iota(jnp.int32, logits.shape, 1)
    mx = jnp.max(logits, axis=-1, keepdims=True)
    pred = jnp.min(jnp.where(logits == mx, cls, jnp.int32(2 ** 30)),
                   axis=-1, keepdims=True)            # (P_pad, 1)

    # ---- lane-dense writeback: (P_pad,1) -> (1,P_pad) via diag-mask + sum ----
    r = jax.lax.broadcasted_iota(jnp.int32, (P_pad, P_pad), 0)
    c = jax.lax.broadcasted_iota(jnp.int32, (P_pad, P_pad), 1)
    out_ref[...] = jnp.sum(jnp.where(r == c, pred, 0), axis=0, keepdims=True)


def g2pmt_forward(kparams, x, target_idx):
    """Pallas equivalent of G2pMT.forward(x, target_idx).

    x:          int32 (1, L) token ids (torch usage always has a leading 1)
    target_idx: int32 (P,) positions of polyphonic characters
    returns:    int32 (P,) argmax class ids
    """
    assert x.shape[0] == 1
    L = x.shape[1]
    P = target_idx.shape[0]
    L_pad = max(8, -(-L // 8) * 8)
    P_pad = max(8, -(-P // 8) * 8)

    # NOTE: lengths = sum(sign(x), axis=1) in the torch code only feeds
    # len(lengths) == 1 (batch of 1) and never affects the result.

    ids = jnp.zeros((L_pad,), jnp.int32).at[:L].set(x[0].astype(jnp.int32))
    tgt = jnp.zeros((P_pad, 1), jnp.int32).at[:P, 0].set(target_idx.astype(jnp.int32))

    smem = pl.BlockSpec(memory_space=pltpu.MemorySpace.SMEM)
    vmem = pl.BlockSpec(memory_space=pltpu.MemorySpace.VMEM)
    hbm = pl.BlockSpec(memory_space=pl.ANY)   # embedding table stays in HBM

    out = pl.pallas_call(
        _g2pm_kernel,
        out_shape=jax.ShapeDtypeStruct((1, P_pad), jnp.int32),
        in_specs=[smem, vmem, hbm, vmem, vmem, vmem, vmem, vmem, vmem],
        out_specs=vmem,
        scratch_shapes=[
            pltpu.VMEM((L_pad, EMB), jnp.float32),   # gathered embedding rows
            pltpu.SemaphoreType.DMA((L_pad,)),       # one sem per row DMA
        ],
    )(ids, tgt,
      kparams["emb"], kparams["w_gates"], kparams["b_gates"],
      kparams["w1"], kparams["b1"], kparams["w2"], kparams["b2"])
    return out[0, :P]


def init_params(key):
    """Deterministic synthetic parameters with the module's true shapes."""
    ks = jax.random.split(key, 14)
    rn = lambda k, s: 0.1 * jax.random.normal(k, s, jnp.float32)

    raw = dict(
        emb=rn(ks[0], (VOCAB, EMB)),
        # nn.LSTM(64, 32, bidirectional=True): gate order i, f, g, o
        w_ih_f=rn(ks[1], (4 * HID, EMB)), w_hh_f=rn(ks[2], (4 * HID, HID)),
        b_ih_f=rn(ks[3], (4 * HID,)),     b_hh_f=rn(ks[4], (4 * HID,)),
        w_ih_b=rn(ks[5], (4 * HID, EMB)), w_hh_b=rn(ks[6], (4 * HID, HID)),
        b_ih_b=rn(ks[7], (4 * HID,)),     b_hh_b=rn(ks[8], (4 * HID,)),
        # logit_layer: Linear(64,32), Linear(32,876)
        w1=rn(ks[9], (HID, 2 * HID)),     b1=rn(ks[10], (HID,)),
        w2=rn(ks[11], (NCLS, HID)),       b2=rn(ks[12], (NCLS,)),
    )

    # Kernel-side preprocessing (pure parameter plumbing; h0 = 0 so w_hh only
    # contributes through its bias).
    bf = raw["b_ih_f"] + raw["b_hh_f"]
    bb = raw["b_ih_b"] + raw["b_hh_b"]

    def gate(lo, hi):
        w = jnp.concatenate([raw["w_ih_f"][lo:hi].T, raw["w_ih_b"][lo:hi].T], axis=1)
        b = jnp.concatenate([bf[lo:hi], bb[lo:hi]])
        return w, b                                   # (64, 64), (64,)

    wi, bi = gate(0, HID)                 # input gate
    wg, bg = gate(2 * HID, 3 * HID)       # cell candidate
    wo, bo = gate(3 * HID, 4 * HID)       # output gate

    # Fused lane-dense gate weights: [ i | g | o | 0-pad ] -> (64, 256)
    w_gates = (jnp.zeros((EMB, GATES_PAD), jnp.float32)
               .at[:, 0:H2].set(wi)
               .at[:, H2:2 * H2].set(wg)
               .at[:, 2 * H2:3 * H2].set(wo))
    b_gates = (jnp.zeros((1, GATES_PAD), jnp.float32)
               .at[0, 0:H2].set(bi)
               .at[0, H2:2 * H2].set(bg)
               .at[0, 2 * H2:3 * H2].set(bo))

    emb_pad = jnp.zeros((VOCAB_PAD, EMB), jnp.float32).at[:VOCAB].set(raw["emb"])
    w2_pad = jnp.zeros((HID, NCLS_PAD), jnp.float32).at[:, :NCLS].set(raw["w2"].T)
    b2_pad = jnp.full((1, NCLS_PAD), -1e30, jnp.float32).at[0, :NCLS].set(raw["b2"])

    kparams = dict(
        emb=emb_pad, w_gates=w_gates, b_gates=b_gates,
        w1=raw["w1"].T, b1=raw["b1"][None, :], w2=w2_pad, b2=b2_pad,
    )
    return raw, kparams


def reference_forward(raw, x, target_idx):
    """Pure-JAX transliteration of the torch forward (for verification)."""
    e = raw["emb"][x]                                 # (1, L, 64)

    def lstm_step(et, w_ih, w_hh, b_ih, b_hh):
        gates = et @ w_ih.T + b_ih + b_hh             # h0 = 0
        i, f, g, o = jnp.split(gates, 4, axis=-1)
        i, f, o = jax.nn.sigmoid(i), jax.nn.sigmoid(f), jax.nn.sigmoid(o)
        g = jnp.tanh(g)
        c = i * g                                     # c0 = 0
        return o * jnp.tanh(c)

    hf = lstm_step(e[0], raw["w_ih_f"], raw["w_hh_f"], raw["b_ih_f"], raw["b_hh_f"])
    hb = lstm_step(e[0], raw["w_ih_b"], raw["w_hh_b"], raw["b_ih_b"], raw["b_hh_b"])
    h = jnp.concatenate([hf, hb], axis=-1)            # (L, 64)
    sel = h[target_idx]                               # (P, 64)
    z = jnp.maximum(sel @ raw["w1"].T + raw["b1"], 0.0)
    logits = z @ raw["w2"].T + raw["b2"]
    return jnp.argmax(logits, axis=1)


if __name__ == "__main__":
    key = jax.random.PRNGKey(0)
    pkey, xkey = jax.random.split(key)
    raw, kparams = init_params(pkey)

    L, P = 12, 3
    x = jax.random.randint(xkey, (1, L), 1, VOCAB, dtype=jnp.int32)
    target_idx = jnp.array([2, 5, 9], dtype=jnp.int32)

    preds = g2pmt_forward(kparams, x, target_idx)
    preds = jax.block_until_ready(preds)

    ref = reference_forward(raw, x, target_idx).astype(jnp.int32)
    assert preds.shape == (P,)
    assert jnp.array_equal(preds, ref), (preds, ref)

    # TODO(synk): the pickle-based cedict/char2idx string pre/post-processing
    # in __call__ is host-side logic with no tensor/Pallas equivalent.
    print("KERNEL_OK")
</pallas_src>

<mosaic_0001>
module attributes {stable_mosaic.version = 11 : i64} {
  func.func @_g2pm_kernel(%arg0: memref<16xi32, #tpu.memory_space<smem>>, %arg1: memref<8x1xi32, #tpu.memory_space<vmem>>, %arg2: memref<5400x64xf32, #tpu.memory_space<any>>, %arg3: memref<64x256xf32, #tpu.memory_space<vmem>>, %arg4: memref<1x256xf32, #tpu.memory_space<vmem>>, %arg5: memref<64x32xf32, #tpu.memory_space<vmem>>, %arg6: memref<1x32xf32, #tpu.memory_space<vmem>>, %arg7: memref<32x896xf32, #tpu.memory_space<vmem>>, %arg8: memref<1x896xf32, #tpu.memory_space<vmem>>, %arg9: memref<1x8xi32, #tpu.memory_space<vmem>>, %arg10: memref<16x64xf32, #tpu.memory_space<vmem>>, %arg11: memref<16x!tpu.dma_semaphore, #tpu.memory_space<semaphore_mem>>) attributes {dimension_semantics = [], scalar_prefetch = 0 : i64, scratch_operands = 2 : i64, tpu.core_type = #tpu.core_type<tc>} {
    %c0 = arith.constant 0 : index
    %0 = memref.load %arg0[%c0] : memref<16xi32, #tpu.memory_space<smem>>
    %c1 = arith.constant 1 : index
    %1 = memref.load %arg0[%c1] : memref<16xi32, #tpu.memory_space<smem>>
    %c2 = arith.constant 2 : index
    %2 = memref.load %arg0[%c2] : memref<16xi32, #tpu.memory_space<smem>>
    %c3 = arith.constant 3 : index
    %3 = memref.load %arg0[%c3] : memref<16xi32, #tpu.memory_space<smem>>
    %c4 = arith.constant 4 : index
    %4 = memref.load %arg0[%c4] : memref<16xi32, #tpu.memory_space<smem>>
    %c5 = arith.constant 5 : index
    %5 = memref.load %arg0[%c5] : memref<16xi32, #tpu.memory_space<smem>>
    %c6 = arith.constant 6 : index
    %6 = memref.load %arg0[%c6] : memref<16xi32, #tpu.memory_space<smem>>
    %c7 = arith.constant 7 : index
    %7 = memref.load %arg0[%c7] : memref<16xi32, #tpu.memory_space<smem>>
    %c8 = arith.constant 8 : index
    %8 = memref.load %arg0[%c8] : memref<16xi32, #tpu.memory_space<smem>>
    %c9 = arith.constant 9 : index
    %9 = memref.load %arg0[%c9] : memref<16xi32, #tpu.memory_space<smem>>
    %c10 = arith.constant 10 : index
    %10 = memref.load %arg0[%c10] : memref<16xi32, #tpu.memory_space<smem>>
    %c11 = arith.constant 11 : index
    %11 = memref.load %arg0[%c11] : memref<16xi32, #tpu.memory_space<smem>>
    %c12 = arith.constant 12 : index
    %12 = memref.load %arg0[%c12] : memref<16xi32, #tpu.memory_space<smem>>
    %c13 = arith.constant 13 : index
    %13 = memref.load %arg0[%c13] : memref<16xi32, #tpu.memory_space<smem>>
    %c14 = arith.constant 14 : index
    %14 = memref.load %arg0[%c14] : memref<16xi32, #tpu.memory_space<smem>>
    %c15 = arith.constant 15 : index
    %15 = memref.load %arg0[%c15] : memref<16xi32, #tpu.memory_space<smem>>
    %c0_i32 = arith.constant 0 : i32
    %c0_i32_0 = arith.constant 0 : i32
    %16 = tpu.memref_slice %arg2[%0, %c0_i32_0] : memref<5400x64xf32, #tpu.memory_space<any>> -> memref<1x64xf32, #tpu.memory_space<any>>
    %c0_i32_1 = arith.constant 0 : i32
    %c0_i32_2 = arith.constant 0 : i32
    %17 = tpu.memref_slice %arg10[%c0_i32_1, %c0_i32_2] : memref<16x64xf32, #tpu.memory_space<vmem>> -> memref<1x64xf32, #tpu.memory_space<vmem>>
    %18 = tpu.memref_slice %arg11[%c0_i32] : memref<16x!tpu.dma_semaphore, #tpu.memory_space<semaphore_mem>> -> memref<1x!tpu.dma_semaphore, #tpu.memory_space<semaphore_mem>>
    %19 = tpu.memref_squeeze %18 : memref<1x!tpu.dma_semaphore, #tpu.memory_space<semaphore_mem>> -> memref<!tpu.dma_semaphore, #tpu.memory_space<semaphore_mem>>
    tpu.enqueue_dma source(%16 : memref<1x64xf32, #tpu.memory_space<any>>) target(%17 : memref<1x64xf32, #tpu.memory_space<vmem>>) target_semaphore(%19 : memref<!tpu.dma_semaphore, #tpu.memory_space<semaphore_mem>>)
    %c1_i32 = arith.constant 1 : i32
    %c0_i32_3 = arith.constant 0 : i32
    %20 = tpu.memref_slice %arg2[%1, %c0_i32_3] : memref<5400x64xf32, #tpu.memory_space<any>> -> memref<1x64xf32, #tpu.memory_space<any>>
    %c1_i32_4 = arith.constant 1 : i32
    %c0_i32_5 = arith.constant 0 : i32
    %21 = tpu.memref_slice %arg10[%c1_i32_4, %c0_i32_5] : memref<16x64xf32, #tpu.memory_space<vmem>> -> memref<1x64xf32, #tpu.memory_space<vmem>>
    %22 = tpu.memref_slice %arg11[%c1_i32] : memref<16x!tpu.dma_semaphore, #tpu.memory_space<semaphore_mem>> -> memref<1x!tpu.dma_semaphore, #tpu.memory_space<semaphore_mem>>
    %23 = tpu.memref_squeeze %22 : memref<1x!tpu.dma_semaphore, #tpu.memory_space<semaphore_mem>> -> memref<!tpu.dma_semaphore, #tpu.memory_space<semaphore_mem>>
    tpu.enqueue_dma source(%20 : memref<1x64xf32, #tpu.memory_space<any>>) target(%21 : memref<1x64xf32, #tpu.memory_space<vmem>>) target_semaphore(%23 : memref<!tpu.dma_semaphore, #tpu.memory_space<semaphore_mem>>)
    %c2_i32 = arith.constant 2 : i32
    %c0_i32_6 = arith.constant 0 : i32
    %24 = tpu.memref_slice %arg2[%2, %c0_i32_6] : memref<5400x64xf32, #tpu.memory_space<any>> -> memref<1x64xf32, #tpu.memory_space<any>>
    %c2_i32_7 = arith.constant 2 : i32
    %c0_i32_8 = arith.constant 0 : i32
    %25 = tpu.memref_slice %arg10[%c2_i32_7, %c0_i32_8] : memref<16x64xf32, #tpu.memory_space<vmem>> -> memref<1x64xf32, #tpu.memory_space<vmem>>
    %26 = tpu.memref_slice %arg11[%c2_i32] : memref<16x!tpu.dma_semaphore, #tpu.memory_space<semaphore_mem>> -> memref<1x!tpu.dma_semaphore, #tpu.memory_space<semaphore_mem>>
    %27 = tpu.memref_squeeze %26 : memref<1x!tpu.dma_semaphore, #tpu.memory_space<semaphore_mem>> -> memref<!tpu.dma_semaphore, #tpu.memory_space<semaphore_mem>>
    tpu.enqueue_dma source(%24 : memref<1x64xf32, #tpu.memory_space<any>>) target(%25 : memref<1x64xf32, #tpu.memory_space<vmem>>) target_semaphore(%27 : memref<!tpu.dma_semaphore, #tpu.memory_space<semaphore_mem>>)
    %c3_i32 = arith.constant 3 : i32
    %c0_i32_9 = arith.constant 0 : i32
    %28 = tpu.memref_slice %arg2[%3, %c0_i32_9] : memref<5400x64xf32, #tpu.memory_space<any>> -> memref<1x64xf32, #tpu.memory_space<any>>
    %c3_i32_10 = arith.constant 3 : i32
    %c0_i32_11 = arith.constant 0 : i32
    %29 = tpu.memref_slice %arg10[%c3_i32_10, %c0_i32_11] : memref<16x64xf32, #tpu.memory_space<vmem>> -> memref<1x64xf32, #tpu.memory_space<vmem>>
    %30 = tpu.memref_slice %arg11[%c3_i32] : memref<16x!tpu.dma_semaphore, #tpu.memory_space<semaphore_mem>> -> memref<1x!tpu.dma_semaphore, #tpu.memory_space<semaphore_mem>>
    %31 = tpu.memref_squeeze %30 : memref<1x!tpu.dma_semaphore, #tpu.memory_space<semaphore_mem>> -> memref<!tpu.dma_semaphore, #tpu.memory_space<semaphore_mem>>
    tpu.enqueue_dma source(%28 : memref<1x64xf32, #tpu.memory_space<any>>) target(%29 : memref<1x64xf32, #tpu.memory_space<vmem>>) target_semaphore(%31 : memref<!tpu.dma_semaphore, #tpu.memory_space<semaphore_mem>>)
    %c4_i32 = arith.constant 4 : i32
    %c0_i32_12 = arith.constant 0 : i32
    %32 = tpu.memref_slice %arg2[%4, %c0_i32_12] : memref<5400x64xf32, #tpu.memory_space<any>> -> memref<1x64xf32, #tpu.memory_space<any>>
    %c4_i32_13 = arith.constant 4 : i32
    %c0_i32_14 = arith.constant 0 : i32
    %33 = tpu.memref_slice %arg10[%c4_i32_13, %c0_i32_14] : memref<16x64xf32, #tpu.memory_space<vmem>> -> memref<1x64xf32, #tpu.memory_space<vmem>>
    %34 = tpu.memref_slice %arg11[%c4_i32] : memref<16x!tpu.dma_semaphore, #tpu.memory_space<semaphore_mem>> -> memref<1x!tpu.dma_semaphore, #tpu.memory_space<semaphore_mem>>
    %35 = tpu.memref_squeeze %34 : memref<1x!tpu.dma_semaphore, #tpu.memory_space<semaphore_mem>> -> memref<!tpu.dma_semaphore, #tpu.memory_space<semaphore_mem>>
    tpu.enqueue_dma source(%32 : memref<1x64xf32, #tpu.memory_space<any>>) target(%33 : memref<1x64xf32, #tpu.memory_space<vmem>>) target_semaphore(%35 : memref<!tpu.dma_semaphore, #tpu.memory_space<semaphore_mem>>)
    %c5_i32 = arith.constant 5 : i32
    %c0_i32_15 = arith.constant 0 : i32
    %36 = tpu.memref_slice %arg2[%5, %c0_i32_15] : memref<5400x64xf32, #tpu.memory_space<any>> -> memref<1x64xf32, #tpu.memory_space<any>>
    %c5_i32_16 = arith.constant 5 : i32
    %c0_i32_17 = arith.constant 0 : i32
    %37 = tpu.memref_slice %arg10[%c5_i32_16, %c0_i32_17] : memref<16x64xf32, #tpu.memory_space<vmem>> -> memref<1x64xf32, #tpu.memory_space<vmem>>
    %38 = tpu.memref_slice %arg11[%c5_i32] : memref<16x!tpu.dma_semaphore, #tpu.memory_space<semaphore_mem>> -> memref<1x!tpu.dma_semaphore, #tpu.memory_space<semaphore_mem>>
    %39 = tpu.memref_squeeze %38 : memref<1x!tpu.dma_semaphore, #tpu.memory_space<semaphore_mem>> -> memref<!tpu.dma_semaphore, #tpu.memory_space<semaphore_mem>>
    tpu.enqueue_dma source(%36 : memref<1x64xf32, #tpu.memory_space<any>>) target(%37 : memref<1x64xf32, #tpu.memory_space<vmem>>) target_semaphore(%39 : memref<!tpu.dma_semaphore, #tpu.memory_space<semaphore_mem>>)
    %c6_i32 = arith.constant 6 : i32
    %c0_i32_18 = arith.constant 0 : i32
    %40 = tpu.memref_slice %arg2[%6, %c0_i32_18] : memref<5400x64xf32, #tpu.memory_space<any>> -> memref<1x64xf32, #tpu.memory_space<any>>
    %c6_i32_19 = arith.constant 6 : i32
    %c0_i32_20 = arith.constant 0 : i32
    %41 = tpu.memref_slice %arg10[%c6_i32_19, %c0_i32_20] : memref<16x64xf32, #tpu.memory_space<vmem>> -> memref<1x64xf32, #tpu.memory_space<vmem>>
    %42 = tpu.memref_slice %arg11[%c6_i32] : memref<16x!tpu.dma_semaphore, #tpu.memory_space<semaphore_mem>> -> memref<1x!tpu.dma_semaphore, #tpu.memory_space<semaphore_mem>>
    %43 = tpu.memref_squeeze %42 : memref<1x!tpu.dma_semaphore, #tpu.memory_space<semaphore_mem>> -> memref<!tpu.dma_semaphore, #tpu.memory_space<semaphore_mem>>
    tpu.enqueue_dma source(%40 : memref<1x64xf32, #tpu.memory_space<any>>) target(%41 : memref<1x64xf32, #tpu.memory_space<vmem>>) target_semaphore(%43 : memref<!tpu.dma_semaphore, #tpu.memory_space<semaphore_mem>>)
    %c7_i32 = arith.constant 7 : i32
    %c0_i32_21 = arith.constant 0 : i32
    %44 = tpu.memref_slice %arg2[%7, %c0_i32_21] : memref<5400x64xf32, #tpu.memory_space<any>> -> memref<1x64xf32, #tpu.memory_space<any>>
    %c7_i32_22 = arith.constant 7 : i32
    %c0_i32_23 = arith.constant 0 : i32
    %45 = tpu.memref_slice %arg10[%c7_i32_22, %c0_i32_23] : memref<16x64xf32, #tpu.memory_space<vmem>> -> memref<1x64xf32, #tpu.memory_space<vmem>>
    %46 = tpu.memref_slice %arg11[%c7_i32] : memref<16x!tpu.dma_semaphore, #tpu.memory_space<semaphore_mem>> -> memref<1x!tpu.dma_semaphore, #tpu.memory_space<semaphore_mem>>
    %47 = tpu.memref_squeeze %46 : memref<1x!tpu.dma_semaphore, #tpu.memory_space<semaphore_mem>> -> memref<!tpu.dma_semaphore, #tpu.memory_space<semaphore_mem>>
    tpu.enqueue_dma source(%44 : memref<1x64xf32, #tpu.memory_space<any>>) target(%45 : memref<1x64xf32, #tpu.memory_space<vmem>>) target_semaphore(%47 : memref<!tpu.dma_semaphore, #tpu.memory_space<semaphore_mem>>)
    %c8_i32 = arith.constant 8 : i32
    %c0_i32_24 = arith.constant 0 : i32
    %48 = tpu.memref_slice %arg2[%8, %c0_i32_24] : memref<5400x64xf32, #tpu.memory_space<any>> -> memref<1x64xf32, #tpu.memory_space<any>>
    %c8_i32_25 = arith.constant 8 : i32
    %c0_i32_26 = arith.constant 0 : i32
    %49 = tpu.memref_slice %arg10[%c8_i32_25, %c0_i32_26] : memref<16x64xf32, #tpu.memory_space<vmem>> -> memref<1x64xf32, #tpu.memory_space<vmem>>
    %50 = tpu.memref_slice %arg11[%c8_i32] : memref<16x!tpu.dma_semaphore, #tpu.memory_space<semaphore_mem>> -> memref<1x!tpu.dma_semaphore, #tpu.memory_space<semaphore_mem>>
    %51 = tpu.memref_squeeze %50 : memref<1x!tpu.dma_semaphore, #tpu.memory_space<semaphore_mem>> -> memref<!tpu.dma_semaphore, #tpu.memory_space<semaphore_mem>>
    tpu.enqueue_dma source(%48 : memref<1x64xf32, #tpu.memory_space<any>>) target(%49 : memref<1x64xf32, #tpu.memory_space<vmem>>) target_semaphore(%51 : memref<!tpu.dma_semaphore, #tpu.memory_space<semaphore_mem>>)
    %c9_i32 = arith.constant 9 : i32
    %c0_i32_27 = arith.constant 0 : i32
    %52 = tpu.memref_slice %arg2[%9, %c0_i32_27] : memref<5400x64xf32, #tpu.memory_space<any>> -> memref<1x64xf32, #tpu.memory_space<any>>
    %c9_i32_28 = arith.constant 9 : i32
    %c0_i32_29 = arith.constant 0 : i32
    %53 = tpu.memref_slice %arg10[%c9_i32_28, %c0_i32_29] : memref<16x64xf32, #tpu.memory_space<vmem>> -> memref<1x64xf32, #tpu.memory_space<vmem>>
    %54 = tpu.memref_slice %arg11[%c9_i32] : memref<16x!tpu.dma_semaphore, #tpu.memory_space<semaphore_mem>> -> memref<1x!tpu.dma_semaphore, #tpu.memory_space<semaphore_mem>>
    %55 = tpu.memref_squeeze %54 : memref<1x!tpu.dma_semaphore, #tpu.memory_space<semaphore_mem>> -> memref<!tpu.dma_semaphore, #tpu.memory_space<semaphore_mem>>
    tpu.enqueue_dma source(%52 : memref<1x64xf32, #tpu.memory_space<any>>) target(%53 : memref<1x64xf32, #tpu.memory_space<vmem>>) target_semaphore(%55 : memref<!tpu.dma_semaphore, #tpu.memory_space<semaphore_mem>>)
    %c10_i32 = arith.constant 10 : i32
    %c0_i32_30 = arith.constant 0 : i32
    %56 = tpu.memref_slice %arg2[%10, %c0_i32_30] : memref<5400x64xf32, #tpu.memory_space<any>> -> memref<1x64xf32, #tpu.memory_space<any>>
    %c10_i32_31 = arith.constant 10 : i32
    %c0_i32_32 = arith.constant 0 : i32
    %57 = tpu.memref_slice %arg10[%c10_i32_31, %c0_i32_32] : memref<16x64xf32, #tpu.memory_space<vmem>> -> memref<1x64xf32, #tpu.memory_space<vmem>>
    %58 = tpu.memref_slice %arg11[%c10_i32] : memref<16x!tpu.dma_semaphore, #tpu.memory_space<semaphore_mem>> -> memref<1x!tpu.dma_semaphore, #tpu.memory_space<semaphore_mem>>
    %59 = tpu.memref_squeeze %58 : memref<1x!tpu.dma_semaphore, #tpu.memory_space<semaphore_mem>> -> memref<!tpu.dma_semaphore, #tpu.memory_space<semaphore_mem>>
    tpu.enqueue_dma source(%56 : memref<1x64xf32, #tpu.memory_space<any>>) target(%57 : memref<1x64xf32, #tpu.memory_space<vmem>>) target_semaphore(%59 : memref<!tpu.dma_semaphore, #tpu.memory_space<semaphore_mem>>)
    %c11_i32 = arith.constant 11 : i32
    %c0_i32_33 = arith.constant 0 : i32
    %60 = tpu.memref_slice %arg2[%11, %c0_i32_33] : memref<5400x64xf32, #tpu.memory_space<any>> -> memref<1x64xf32, #tpu.memory_space<any>>
    %c11_i32_34 = arith.constant 11 : i32
    %c0_i32_35 = arith.constant 0 : i32
    %61 = tpu.memref_slice %arg10[%c11_i32_34, %c0_i32_35] : memref<16x64xf32, #tpu.memory_space<vmem>> -> memref<1x64xf32, #tpu.memory_space<vmem>>
    %62 = tpu.memref_slice %arg11[%c11_i32] : memref<16x!tpu.dma_semaphore, #tpu.memory_space<semaphore_mem>> -> memref<1x!tpu.dma_semaphore, #tpu.memory_space<semaphore_mem>>
    %63 = tpu.memref_squeeze %62 : memref<1x!tpu.dma_semaphore, #tpu.memory_space<semaphore_mem>> -> memref<!tpu.dma_semaphore, #tpu.memory_space<semaphore_mem>>
    tpu.enqueue_dma source(%60 : memref<1x64xf32, #tpu.memory_space<any>>) target(%61 : memref<1x64xf32, #tpu.memory_space<vmem>>) target_semaphore(%63 : memref<!tpu.dma_semaphore, #tpu.memory_space<semaphore_mem>>)
    %c12_i32 = arith.constant 12 : i32
    %c0_i32_36 = arith.constant 0 : i32
    %64 = tpu.memref_slice %arg2[%12, %c0_i32_36] : memref<5400x64xf32, #tpu.memory_space<any>> -> memref<1x64xf32, #tpu.memory_space<any>>
    %c12_i32_37 = arith.constant 12 : i32
    %c0_i32_38 = arith.constant 0 : i32
    %65 = tpu.memref_slice %arg10[%c12_i32_37, %c0_i32_38] : memref<16x64xf32, #tpu.memory_space<vmem>> -> memref<1x64xf32, #tpu.memory_space<vmem>>
    %66 = tpu.memref_slice %arg11[%c12_i32] : memref<16x!tpu.dma_semaphore, #tpu.memory_space<semaphore_mem>> -> memref<1x!tpu.dma_semaphore, #tpu.memory_space<semaphore_mem>>
    %67 = tpu.memref_squeeze %66 : memref<1x!tpu.dma_semaphore, #tpu.memory_space<semaphore_mem>> -> memref<!tpu.dma_semaphore, #tpu.memory_space<semaphore_mem>>
    tpu.enqueue_dma source(%64 : memref<1x64xf32, #tpu.memory_space<any>>) target(%65 : memref<1x64xf32, #tpu.memory_space<vmem>>) target_semaphore(%67 : memref<!tpu.dma_semaphore, #tpu.memory_space<semaphore_mem>>)
    %c13_i32 = arith.constant 13 : i32
    %c0_i32_39 = arith.constant 0 : i32
    %68 = tpu.memref_slice %arg2[%13, %c0_i32_39] : memref<5400x64xf32, #tpu.memory_space<any>> -> memref<1x64xf32, #tpu.memory_space<any>>
    %c13_i32_40 = arith.constant 13 : i32
    %c0_i32_41 = arith.constant 0 : i32
    %69 = tpu.memref_slice %arg10[%c13_i32_40, %c0_i32_41] : memref<16x64xf32, #tpu.memory_space<vmem>> -> memref<1x64xf32, #tpu.memory_space<vmem>>
    %70 = tpu.memref_slice %arg11[%c13_i32] : memref<16x!tpu.dma_semaphore, #tpu.memory_space<semaphore_mem>> -> memref<1x!tpu.dma_semaphore, #tpu.memory_space<semaphore_mem>>
    %71 = tpu.memref_squeeze %70 : memref<1x!tpu.dma_semaphore, #tpu.memory_space<semaphore_mem>> -> memref<!tpu.dma_semaphore, #tpu.memory_space<semaphore_mem>>
    tpu.enqueue_dma source(%68 : memref<1x64xf32, #tpu.memory_space<any>>) target(%69 : memref<1x64xf32, #tpu.memory_space<vmem>>) target_semaphore(%71 : memref<!tpu.dma_semaphore, #tpu.memory_space<semaphore_mem>>)
    %c14_i32 = arith.constant 14 : i32
    %c0_i32_42 = arith.constant 0 : i32
    %72 = tpu.memref_slice %arg2[%14, %c0_i32_42] : memref<5400x64xf32, #tpu.memory_space<any>> -> memref<1x64xf32, #tpu.memory_space<any>>
    %c14_i32_43 = arith.constant 14 : i32
    %c0_i32_44 = arith.constant 0 : i32
    %73 = tpu.memref_slice %arg10[%c14_i32_43, %c0_i32_44] : memref<16x64xf32, #tpu.memory_space<vmem>> -> memref<1x64xf32, #tpu.memory_space<vmem>>
    %74 = tpu.memref_slice %arg11[%c14_i32] : memref<16x!tpu.dma_semaphore, #tpu.memory_space<semaphore_mem>> -> memref<1x!tpu.dma_semaphore, #tpu.memory_space<semaphore_mem>>
    %75 = tpu.memref_squeeze %74 : memref<1x!tpu.dma_semaphore, #tpu.memory_space<semaphore_mem>> -> memref<!tpu.dma_semaphore, #tpu.memory_space<semaphore_mem>>
    tpu.enqueue_dma source(%72 : memref<1x64xf32, #tpu.memory_space<any>>) target(%73 : memref<1x64xf32, #tpu.memory_space<vmem>>) target_semaphore(%75 : memref<!tpu.dma_semaphore, #tpu.memory_space<semaphore_mem>>)
    %c15_i32 = arith.constant 15 : i32
    %c0_i32_45 = arith.constant 0 : i32
    %76 = tpu.memref_slice %arg2[%15, %c0_i32_45] : memref<5400x64xf32, #tpu.memory_space<any>> -> memref<1x64xf32, #tpu.memory_space<any>>
    %c15_i32_46 = arith.constant 15 : i32
    %c0_i32_47 = arith.constant 0 : i32
    %77 = tpu.memref_slice %arg10[%c15_i32_46, %c0_i32_47] : memref<16x64xf32, #tpu.memory_space<vmem>> -> memref<1x64xf32, #tpu.memory_space<vmem>>
    %78 = tpu.memref_slice %arg11[%c15_i32] : memref<16x!tpu.dma_semaphore, #tpu.memory_space<semaphore_mem>> -> memref<1x!tpu.dma_semaphore, #tpu.memory_space<semaphore_mem>>
    %79 = tpu.memref_squeeze %78 : memref<1x!tpu.dma_semaphore, #tpu.memory_space<semaphore_mem>> -> memref<!tpu.dma_semaphore, #tpu.memory_space<semaphore_mem>>
    tpu.enqueue_dma source(%76 : memref<1x64xf32, #tpu.memory_space<any>>) target(%77 : memref<1x64xf32, #tpu.memory_space<vmem>>) target_semaphore(%79 : memref<!tpu.dma_semaphore, #tpu.memory_space<semaphore_mem>>)
    %c0_i32_48 = arith.constant 0 : i32
    %c0_i32_49 = arith.constant 0 : i32
    %80 = tpu.memref_slice %arg2[%0, %c0_i32_49] : memref<5400x64xf32, #tpu.memory_space<any>> -> memref<1x64xf32, #tpu.memory_space<any>>
    %c0_i32_50 = arith.constant 0 : i32
    %c0_i32_51 = arith.constant 0 : i32
    %81 = tpu.memref_slice %arg10[%c0_i32_50, %c0_i32_51] : memref<16x64xf32, #tpu.memory_space<vmem>> -> memref<1x64xf32, #tpu.memory_space<vmem>>
    %82 = tpu.memref_slice %arg11[%c0_i32_48] : memref<16x!tpu.dma_semaphore, #tpu.memory_space<semaphore_mem>> -> memref<1x!tpu.dma_semaphore, #tpu.memory_space<semaphore_mem>>
    %83 = tpu.memref_squeeze %82 : memref<1x!tpu.dma_semaphore, #tpu.memory_space<semaphore_mem>> -> memref<!tpu.dma_semaphore, #tpu.memory_space<semaphore_mem>>
    tpu.wait_dma2 semaphore(%83 : memref<!tpu.dma_semaphore, #tpu.memory_space<semaphore_mem>>) src(%80 : memref<1x64xf32, #tpu.memory_space<any>>) dst(%81 : memref<1x64xf32, #tpu.memory_space<vmem>>)
    %c1_i32_52 = arith.constant 1 : i32
    %c0_i32_53 = arith.constant 0 : i32
    %84 = tpu.memref_slice %arg2[%1, %c0_i32_53] : memref<5400x64xf32, #tpu.memory_space<any>> -> memref<1x64xf32, #tpu.memory_space<any>>
    %c1_i32_54 = arith.constant 1 : i32
    %c0_i32_55 = arith.constant 0 : i32
    %85 = tpu.memref_slice %arg10[%c1_i32_54, %c0_i32_55] : memref<16x64xf32, #tpu.memory_space<vmem>> -> memref<1x64xf32, #tpu.memory_space<vmem>>
    %86 = tpu.memref_slice %arg11[%c1_i32_52] : memref<16x!tpu.dma_semaphore, #tpu.memory_space<semaphore_mem>> -> memref<1x!tpu.dma_semaphore, #tpu.memory_space<semaphore_mem>>
    %87 = tpu.memref_squeeze %86 : memref<1x!tpu.dma_semaphore, #tpu.memory_space<semaphore_mem>> -> memref<!tpu.dma_semaphore, #tpu.memory_space<semaphore_mem>>
    tpu.wait_dma2 semaphore(%87 : memref<!tpu.dma_semaphore, #tpu.memory_space<semaphore_mem>>) src(%84 : memref<1x64xf32, #tpu.memory_space<any>>) dst(%85 : memref<1x64xf32, #tpu.memory_space<vmem>>)
    %c2_i32_56 = arith.constant 2 : i32
    %c0_i32_57 = arith.constant 0 : i32
    %88 = tpu.memref_slice %arg2[%2, %c0_i32_57] : memref<5400x64xf32, #tpu.memory_space<any>> -> memref<1x64xf32, #tpu.memory_space<any>>
    %c2_i32_58 = arith.constant 2 : i32
    %c0_i32_59 = arith.constant 0 : i32
    %89 = tpu.memref_slice %arg10[%c2_i32_58, %c0_i32_59] : memref<16x64xf32, #tpu.memory_space<vmem>> -> memref<1x64xf32, #tpu.memory_space<vmem>>
    %90 = tpu.memref_slice %arg11[%c2_i32_56] : memref<16x!tpu.dma_semaphore, #tpu.memory_space<semaphore_mem>> -> memref<1x!tpu.dma_semaphore, #tpu.memory_space<semaphore_mem>>
    %91 = tpu.memref_squeeze %90 : memref<1x!tpu.dma_semaphore, #tpu.memory_space<semaphore_mem>> -> memref<!tpu.dma_semaphore, #tpu.memory_space<semaphore_mem>>
    tpu.wait_dma2 semaphore(%91 : memref<!tpu.dma_semaphore, #tpu.memory_space<semaphore_mem>>) src(%88 : memref<1x64xf32, #tpu.memory_space<any>>) dst(%89 : memref<1x64xf32, #tpu.memory_space<vmem>>)
    %c3_i32_60 = arith.constant 3 : i32
    %c0_i32_61 = arith.constant 0 : i32
    %92 = tpu.memref_slice %arg2[%3, %c0_i32_61] : memref<5400x64xf32, #tpu.memory_space<any>> -> memref<1x64xf32, #tpu.memory_space<any>>
    %c3_i32_62 = arith.constant 3 : i32
    %c0_i32_63 = arith.constant 0 : i32
    %93 = tpu.memref_slice %arg10[%c3_i32_62, %c0_i32_63] : memref<16x64xf32, #tpu.memory_space<vmem>> -> memref<1x64xf32, #tpu.memory_space<vmem>>
    %94 = tpu.memref_slice %arg11[%c3_i32_60] : memref<16x!tpu.dma_semaphore, #tpu.memory_space<semaphore_mem>> -> memref<1x!tpu.dma_semaphore, #tpu.memory_space<semaphore_mem>>
    %95 = tpu.memref_squeeze %94 : memref<1x!tpu.dma_semaphore, #tpu.memory_space<semaphore_mem>> -> memref<!tpu.dma_semaphore, #tpu.memory_space<semaphore_mem>>
    tpu.wait_dma2 semaphore(%95 : memref<!tpu.dma_semaphore, #tpu.memory_space<semaphore_mem>>) src(%92 : memref<1x64xf32, #tpu.memory_space<any>>) dst(%93 : memref<1x64xf32, #tpu.memory_space<vmem>>)
    %c4_i32_64 = arith.constant 4 : i32
    %c0_i32_65 = arith.constant 0 : i32
    %96 = tpu.memref_slice %arg2[%4, %c0_i32_65] : memref<5400x64xf32, #tpu.memory_space<any>> -> memref<1x64xf32, #tpu.memory_space<any>>
    %c4_i32_66 = arith.constant 4 : i32
    %c0_i32_67 = arith.constant 0 : i32
    %97 = tpu.memref_slice %arg10[%c4_i32_66, %c0_i32_67] : memref<16x64xf32, #tpu.memory_space<vmem>> -> memref<1x64xf32, #tpu.memory_space<vmem>>
    %98 = tpu.memref_slice %arg11[%c4_i32_64] : memref<16x!tpu.dma_semaphore, #tpu.memory_space<semaphore_mem>> -> memref<1x!tpu.dma_semaphore, #tpu.memory_space<semaphore_mem>>
    %99 = tpu.memref_squeeze %98 : memref<1x!tpu.dma_semaphore, #tpu.memory_space<semaphore_mem>> -> memref<!tpu.dma_semaphore, #tpu.memory_space<semaphore_mem>>
    tpu.wait_dma2 semaphore(%99 : memref<!tpu.dma_semaphore, #tpu.memory_space<semaphore_mem>>) src(%96 : memref<1x64xf32, #tpu.memory_space<any>>) dst(%97 : memref<1x64xf32, #tpu.memory_space<vmem>>)
    %c5_i32_68 = arith.constant 5 : i32
    %c0_i32_69 = arith.constant 0 : i32
    %100 = tpu.memref_slice %arg2[%5, %c0_i32_69] : memref<5400x64xf32, #tpu.memory_space<any>> -> memref<1x64xf32, #tpu.memory_space<any>>
    %c5_i32_70 = arith.constant 5 : i32
    %c0_i32_71 = arith.constant 0 : i32
    %101 = tpu.memref_slice %arg10[%c5_i32_70, %c0_i32_71] : memref<16x64xf32, #tpu.memory_space<vmem>> -> memref<1x64xf32, #tpu.memory_space<vmem>>
    %102 = tpu.memref_slice %arg11[%c5_i32_68] : memref<16x!tpu.dma_semaphore, #tpu.memory_space<semaphore_mem>> -> memref<1x!tpu.dma_semaphore, #tpu.memory_space<semaphore_mem>>
    %103 = tpu.memref_squeeze %102 : memref<1x!tpu.dma_semaphore, #tpu.memory_space<semaphore_mem>> -> memref<!tpu.dma_semaphore, #tpu.memory_space<semaphore_mem>>
    tpu.wait_dma2 semaphore(%103 : memref<!tpu.dma_semaphore, #tpu.memory_space<semaphore_mem>>) src(%100 : memref<1x64xf32, #tpu.memory_space<any>>) dst(%101 : memref<1x64xf32, #tpu.memory_space<vmem>>)
    %c6_i32_72 = arith.constant 6 : i32
    %c0_i32_73 = arith.constant 0 : i32
    %104 = tpu.memref_slice %arg2[%6, %c0_i32_73] : memref<5400x64xf32, #tpu.memory_space<any>> -> memref<1x64xf32, #tpu.memory_space<any>>
    %c6_i32_74 = arith.constant 6 : i32
    %c0_i32_75 = arith.constant 0 : i32
    %105 = tpu.memref_slice %arg10[%c6_i32_74, %c0_i32_75] : memref<16x64xf32, #tpu.memory_space<vmem>> -> memref<1x64xf32, #tpu.memory_space<vmem>>
    %106 = tpu.memref_slice %arg11[%c6_i32_72] : memref<16x!tpu.dma_semaphore, #tpu.memory_space<semaphore_mem>> -> memref<1x!tpu.dma_semaphore, #tpu.memory_space<semaphore_mem>>
    %107 = tpu.memref_squeeze %106 : memref<1x!tpu.dma_semaphore, #tpu.memory_space<semaphore_mem>> -> memref<!tpu.dma_semaphore, #tpu.memory_space<semaphore_mem>>
    tpu.wait_dma2 semaphore(%107 : memref<!tpu.dma_semaphore, #tpu.memory_space<semaphore_mem>>) src(%104 : memref<1x64xf32, #tpu.memory_space<any>>) dst(%105 : memref<1x64xf32, #tpu.memory_space<vmem>>)
    %c7_i32_76 = arith.constant 7 : i32
    %c0_i32_77 = arith.constant 0 : i32
    %108 = tpu.memref_slice %arg2[%7, %c0_i32_77] : memref<5400x64xf32, #tpu.memory_space<any>> -> memref<1x64xf32, #tpu.memory_space<any>>
    %c7_i32_78 = arith.constant 7 : i32
    %c0_i32_79 = arith.constant 0 : i32
    %109 = tpu.memref_slice %arg10[%c7_i32_78, %c0_i32_79] : memref<16x64xf32, #tpu.memory_space<vmem>> -> memref<1x64xf32, #tpu.memory_space<vmem>>
    %110 = tpu.memref_slice %arg11[%c7_i32_76] : memref<16x!tpu.dma_semaphore, #tpu.memory_space<semaphore_mem>> -> memref<1x!tpu.dma_semaphore, #tpu.memory_space<semaphore_mem>>
    %111 = tpu.memref_squeeze %110 : memref<1x!tpu.dma_semaphore, #tpu.memory_space<semaphore_mem>> -> memref<!tpu.dma_semaphore, #tpu.memory_space<semaphore_mem>>
    tpu.wait_dma2 semaphore(%111 : memref<!tpu.dma_semaphore, #tpu.memory_space<semaphore_mem>>) src(%108 : memref<1x64xf32, #tpu.memory_space<any>>) dst(%109 : memref<1x64xf32, #tpu.memory_space<vmem>>)
    %c8_i32_80 = arith.constant 8 : i32
    %c0_i32_81 = arith.constant 0 : i32
    %112 = tpu.memref_slice %arg2[%8, %c0_i32_81] : memref<5400x64xf32, #tpu.memory_space<any>> -> memref<1x64xf32, #tpu.memory_space<any>>
    %c8_i32_82 = arith.constant 8 : i32
    %c0_i32_83 = arith.constant 0 : i32
    %113 = tpu.memref_slice %arg10[%c8_i32_82, %c0_i32_83] : memref<16x64xf32, #tpu.memory_space<vmem>> -> memref<1x64xf32, #tpu.memory_space<vmem>>
    %114 = tpu.memref_slice %arg11[%c8_i32_80] : memref<16x!tpu.dma_semaphore, #tpu.memory_space<semaphore_mem>> -> memref<1x!tpu.dma_semaphore, #tpu.memory_space<semaphore_mem>>
    %115 = tpu.memref_squeeze %114 : memref<1x!tpu.dma_semaphore, #tpu.memory_space<semaphore_mem>> -> memref<!tpu.dma_semaphore, #tpu.memory_space<semaphore_mem>>
    tpu.wait_dma2 semaphore(%115 : memref<!tpu.dma_semaphore, #tpu.memory_space<semaphore_mem>>) src(%112 : memref<1x64xf32, #tpu.memory_space<any>>) dst(%113 : memref<1x64xf32, #tpu.memory_space<vmem>>)
    %c9_i32_84 = arith.constant 9 : i32
    %c0_i32_85 = arith.constant 0 : i32
    %116 = tpu.memref_slice %arg2[%9, %c0_i32_85] : memref<5400x64xf32, #tpu.memory_space<any>> -> memref<1x64xf32, #tpu.memory_space<any>>
    %c9_i32_86 = arith.constant 9 : i32
    %c0_i32_87 = arith.constant 0 : i32
    %117 = tpu.memref_slice %arg10[%c9_i32_86, %c0_i32_87] : memref<16x64xf32, #tpu.memory_space<vmem>> -> memref<1x64xf32, #tpu.memory_space<vmem>>
    %118 = tpu.memref_slice %arg11[%c9_i32_84] : memref<16x!tpu.dma_semaphore, #tpu.memory_space<semaphore_mem>> -> memref<1x!tpu.dma_semaphore, #tpu.memory_space<semaphore_mem>>
    %119 = tpu.memref_squeeze %118 : memref<1x!tpu.dma_semaphore, #tpu.memory_space<semaphore_mem>> -> memref<!tpu.dma_semaphore, #tpu.memory_space<semaphore_mem>>
    tpu.wait_dma2 semaphore(%119 : memref<!tpu.dma_semaphore, #tpu.memory_space<semaphore_mem>>) src(%116 : memref<1x64xf32, #tpu.memory_space<any>>) dst(%117 : memref<1x64xf32, #tpu.memory_space<vmem>>)
    %c10_i32_88 = arith.constant 10 : i32
    %c0_i32_89 = arith.constant 0 : i32
    %120 = tpu.memref_slice %arg2[%10, %c0_i32_89] : memref<5400x64xf32, #tpu.memory_space<any>> -> memref<1x64xf32, #tpu.memory_space<any>>
    %c10_i32_90 = arith.constant 10 : i32
    %c0_i32_91 = arith.constant 0 : i32
    %121 = tpu.memref_slice %arg10[%c10_i32_90, %c0_i32_91] : memref<16x64xf32, #tpu.memory_space<vmem>> -> memref<1x64xf32, #tpu.memory_space<vmem>>
    %122 = tpu.memref_slice %arg11[%c10_i32_88] : memref<16x!tpu.dma_semaphore, #tpu.memory_space<semaphore_mem>> -> memref<1x!tpu.dma_semaphore, #tpu.memory_space<semaphore_mem>>
    %123 = tpu.memref_squeeze %122 : memref<1x!tpu.dma_semaphore, #tpu.memory_space<semaphore_mem>> -> memref<!tpu.dma_semaphore, #tpu.memory_space<semaphore_mem>>
    tpu.wait_dma2 semaphore(%123 : memref<!tpu.dma_semaphore, #tpu.memory_space<semaphore_mem>>) src(%120 : memref<1x64xf32, #tpu.memory_space<any>>) dst(%121 : memref<1x64xf32, #tpu.memory_space<vmem>>)
    %c11_i32_92 = arith.constant 11 : i32
    %c0_i32_93 = arith.constant 0 : i32
    %124 = tpu.memref_slice %arg2[%11, %c0_i32_93] : memref<5400x64xf32, #tpu.memory_space<any>> -> memref<1x64xf32, #tpu.memory_space<any>>
    %c11_i32_94 = arith.constant 11 : i32
    %c0_i32_95 = arith.constant 0 : i32
    %125 = tpu.memref_slice %arg10[%c11_i32_94, %c0_i32_95] : memref<16x64xf32, #tpu.memory_space<vmem>> -> memref<1x64xf32, #tpu.memory_space<vmem>>
    %126 = tpu.memref_slice %arg11[%c11_i32_92] : memref<16x!tpu.dma_semaphore, #tpu.memory_space<semaphore_mem>> -> memref<1x!tpu.dma_semaphore, #tpu.memory_space<semaphore_mem>>
    %127 = tpu.memref_squeeze %126 : memref<1x!tpu.dma_semaphore, #tpu.memory_space<semaphore_mem>> -> memref<!tpu.dma_semaphore, #tpu.memory_space<semaphore_mem>>
    tpu.wait_dma2 semaphore(%127 : memref<!tpu.dma_semaphore, #tpu.memory_space<semaphore_mem>>) src(%124 : memref<1x64xf32, #tpu.memory_space<any>>) dst(%125 : memref<1x64xf32, #tpu.memory_space<vmem>>)
    %c12_i32_96 = arith.constant 12 : i32
    %c0_i32_97 = arith.constant 0 : i32
    %128 = tpu.memref_slice %arg2[%12, %c0_i32_97] : memref<5400x64xf32, #tpu.memory_space<any>> -> memref<1x64xf32, #tpu.memory_space<any>>
    %c12_i32_98 = arith.constant 12 : i32
    %c0_i32_99 = arith.constant 0 : i32
    %129 = tpu.memref_slice %arg10[%c12_i32_98, %c0_i32_99] : memref<16x64xf32, #tpu.memory_space<vmem>> -> memref<1x64xf32, #tpu.memory_space<vmem>>
    %130 = tpu.memref_slice %arg11[%c12_i32_96] : memref<16x!tpu.dma_semaphore, #tpu.memory_space<semaphore_mem>> -> memref<1x!tpu.dma_semaphore, #tpu.memory_space<semaphore_mem>>
    %131 = tpu.memref_squeeze %130 : memref<1x!tpu.dma_semaphore, #tpu.memory_space<semaphore_mem>> -> memref<!tpu.dma_semaphore, #tpu.memory_space<semaphore_mem>>
    tpu.wait_dma2 semaphore(%131 : memref<!tpu.dma_semaphore, #tpu.memory_space<semaphore_mem>>) src(%128 : memref<1x64xf32, #tpu.memory_space<any>>) dst(%129 : memref<1x64xf32, #tpu.memory_space<vmem>>)
    %c13_i32_100 = arith.constant 13 : i32
    %c0_i32_101 = arith.constant 0 : i32
    %132 = tpu.memref_slice %arg2[%13, %c0_i32_101] : memref<5400x64xf32, #tpu.memory_space<any>> -> memref<1x64xf32, #tpu.memory_space<any>>
    %c13_i32_102 = arith.constant 13 : i32
    %c0_i32_103 = arith.constant 0 : i32
    %133 = tpu.memref_slice %arg10[%c13_i32_102, %c0_i32_103] : memref<16x64xf32, #tpu.memory_space<vmem>> -> memref<1x64xf32, #tpu.memory_space<vmem>>
    %134 = tpu.memref_slice %arg11[%c13_i32_100] : memref<16x!tpu.dma_semaphore, #tpu.memory_space<semaphore_mem>> -> memref<1x!tpu.dma_semaphore, #tpu.memory_space<semaphore_mem>>
    %135 = tpu.memref_squeeze %134 : memref<1x!tpu.dma_semaphore, #tpu.memory_space<semaphore_mem>> -> memref<!tpu.dma_semaphore, #tpu.memory_space<semaphore_mem>>
    tpu.wait_dma2 semaphore(%135 : memref<!tpu.dma_semaphore, #tpu.memory_space<semaphore_mem>>) src(%132 : memref<1x64xf32, #tpu.memory_space<any>>) dst(%133 : memref<1x64xf32, #tpu.memory_space<vmem>>)
    %c14_i32_104 = arith.constant 14 : i32
    %c0_i32_105 = arith.constant 0 : i32
    %136 = tpu.memref_slice %arg2[%14, %c0_i32_105] : memref<5400x64xf32, #tpu.memory_space<any>> -> memref<1x64xf32, #tpu.memory_space<any>>
    %c14_i32_106 = arith.constant 14 : i32
    %c0_i32_107 = arith.constant 0 : i32
    %137 = tpu.memref_slice %arg10[%c14_i32_106, %c0_i32_107] : memref<16x64xf32, #tpu.memory_space<vmem>> -> memref<1x64xf32, #tpu.memory_space<vmem>>
    %138 = tpu.memref_slice %arg11[%c14_i32_104] : memref<16x!tpu.dma_semaphore, #tpu.memory_space<semaphore_mem>> -> memref<1x!tpu.dma_semaphore, #tpu.memory_space<semaphore_mem>>
    %139 = tpu.memref_squeeze %138 : memref<1x!tpu.dma_semaphore, #tpu.memory_space<semaphore_mem>> -> memref<!tpu.dma_semaphore, #tpu.memory_space<semaphore_mem>>
    tpu.wait_dma2 semaphore(%139 : memref<!tpu.dma_semaphore, #tpu.memory_space<semaphore_mem>>) src(%136 : memref<1x64xf32, #tpu.memory_space<any>>) dst(%137 : memref<1x64xf32, #tpu.memory_space<vmem>>)
    %c15_i32_108 = arith.constant 15 : i32
    %c0_i32_109 = arith.constant 0 : i32
    %140 = tpu.memref_slice %arg2[%15, %c0_i32_109] : memref<5400x64xf32, #tpu.memory_space<any>> -> memref<1x64xf32, #tpu.memory_space<any>>
    %c15_i32_110 = arith.constant 15 : i32
    %c0_i32_111 = arith.constant 0 : i32
    %141 = tpu.memref_slice %arg10[%c15_i32_110, %c0_i32_111] : memref<16x64xf32, #tpu.memory_space<vmem>> -> memref<1x64xf32, #tpu.memory_space<vmem>>
    %142 = tpu.memref_slice %arg11[%c15_i32_108] : memref<16x!tpu.dma_semaphore, #tpu.memory_space<semaphore_mem>> -> memref<1x!tpu.dma_semaphore, #tpu.memory_space<semaphore_mem>>
    %143 = tpu.memref_squeeze %142 : memref<1x!tpu.dma_semaphore, #tpu.memory_space<semaphore_mem>> -> memref<!tpu.dma_semaphore, #tpu.memory_space<semaphore_mem>>
    tpu.wait_dma2 semaphore(%143 : memref<!tpu.dma_semaphore, #tpu.memory_space<semaphore_mem>>) src(%140 : memref<1x64xf32, #tpu.memory_space<any>>) dst(%141 : memref<1x64xf32, #tpu.memory_space<vmem>>)
    %c0_112 = arith.constant 0 : index
    %c0_113 = arith.constant 0 : index
    %144 = vector.load %arg10[%c0_112, %c0_113] : memref<16x64xf32, #tpu.memory_space<vmem>>, vector<16x64xf32>
    %c0_114 = arith.constant 0 : index
    %c0_115 = arith.constant 0 : index
    %145 = vector.load %arg3[%c0_114, %c0_115] : memref<64x256xf32, #tpu.memory_space<vmem>>, vector<64x256xf32>
    %cst = arith.constant dense<0.000000e+00> : vector<16x256xf32>
    %146 = tpu.matmul %144, %145, %cst {dimension_numbers = #tpu.dot_dimension_numbers<[1], [0], [0], [1], [0, 0, 1, 1], [], []>} : vector<16x64xf32>, vector<64x256xf32>, vector<16x256xf32> -> vector<16x256xf32>
    %c0_116 = arith.constant 0 : index
    %c0_117 = arith.constant 0 : index
    %147 = vector.load %arg4[%c0_116, %c0_117] : memref<1x256xf32, #tpu.memory_space<vmem>>, vector<1x256xf32>
    %148 = vector.broadcast %147 : vector<1x256xf32> to vector<16x256xf32>
    %149 = arith.addf %146, %148 : vector<16x256xf32>
    %150 = vector.extract_strided_slice %149 {offsets = [0, 0], sizes = [16, 64], strides = [1, 1]} : vector<16x256xf32> to vector<16x64xf32>
    %151 = arith.negf %150 : vector<16x64xf32>
    %152 = math.exp %151 : vector<16x64xf32>
    %cst_118 = arith.constant 1.000000e+00 : f32
    %153 = vector.broadcast %cst_118 : f32 to vector<16x64xf32>
    %154 = arith.addf %153, %152 : vector<16x64xf32>
    %155 = arith.divf %153, %154 : vector<16x64xf32>
    %156 = vector.extract_strided_slice %149 {offsets = [0, 64], sizes = [16, 64], strides = [1, 1]} : vector<16x256xf32> to vector<16x64xf32>
    %157 = math.tanh %156 : vector<16x64xf32>
    %158 = vector.extract_strided_slice %149 {offsets = [0, 128], sizes = [16, 64], strides = [1, 1]} : vector<16x256xf32> to vector<16x64xf32>
    %159 = arith.negf %158 : vector<16x64xf32>
    %160 = math.exp %159 : vector<16x64xf32>
    %cst_119 = arith.constant 1.000000e+00 : f32
    %161 = vector.broadcast %cst_119 : f32 to vector<16x64xf32>
    %162 = arith.addf %161, %160 : vector<16x64xf32>
    %163 = arith.divf %161, %162 : vector<16x64xf32>
    %164 = arith.mulf %155, %157 : vector<16x64xf32>
    %165 = math.tanh %164 : vector<16x64xf32>
    %166 = arith.mulf %163, %165 : vector<16x64xf32>
    %167 = tpu.iota {dimensions = array<i32: 1>} : vector<8x16xi32>
    %c0_120 = arith.constant 0 : index
    %c0_121 = arith.constant 0 : index
    %168 = vector.load %arg1[%c0_120, %c0_121] : memref<8x1xi32, #tpu.memory_space<vmem>>, vector<8x1xi32>
    %169 = vector.broadcast %168 : vector<8x1xi32> to vector<8x16xi32>
    %170 = arith.cmpi eq, %167, %169 : vector<8x16xi32>
    %171 = arith.extui %170 : vector<8x16xi1> to vector<8x16xi32>
    %172 = arith.sitofp %171 : vector<8x16xi32> to vector<8x16xf32>
    %cst_122 = arith.constant dense<0.000000e+00> : vector<8x64xf32>
    %173 = tpu.matmul %172, %166, %cst_122 {dimension_numbers = #tpu.dot_dimension_numbers<[1], [0], [0], [1], [0, 0, 1, 1], [], []>} : vector<8x16xf32>, vector<16x64xf32>, vector<8x64xf32> -> vector<8x64xf32>
    %c0_123 = arith.constant 0 : index
    %c0_124 = arith.constant 0 : index
    %174 = vector.load %arg5[%c0_123, %c0_124] : memref<64x32xf32, #tpu.memory_space<vmem>>, vector<64x32xf32>
    %cst_125 = arith.constant dense<0.000000e+00> : vector<8x32xf32>
    %175 = tpu.matmul %173, %174, %cst_125 {dimension_numbers = #tpu.dot_dimension_numbers<[1], [0], [0], [1], [0, 0, 1, 1], [], []>} : vector<8x64xf32>, vector<64x32xf32>, vector<8x32xf32> -> vector<8x32xf32>
    %c0_126 = arith.constant 0 : index
    %c0_127 = arith.constant 0 : index
    %176 = vector.load %arg6[%c0_126, %c0_127] : memref<1x32xf32, #tpu.memory_space<vmem>>, vector<1x32xf32>
    %177 = vector.broadcast %176 : vector<1x32xf32> to vector<8x32xf32>
    %178 = arith.addf %175, %177 : vector<8x32xf32>
    %cst_128 = arith.constant 0.000000e+00 : f32
    %179 = vector.broadcast %cst_128 : f32 to vector<8x32xf32>
    %180 = arith.maximumf %178, %179 : vector<8x32xf32>
    %c0_129 = arith.constant 0 : index
    %c0_130 = arith.constant 0 : index
    %181 = vector.load %arg7[%c0_129, %c0_130] : memref<32x896xf32, #tpu.memory_space<vmem>>, vector<32x896xf32>
    %cst_131 = arith.constant dense<0.000000e+00> : vector<8x896xf32>
    %182 = tpu.matmul %180, %181, %cst_131 {dimension_numbers = #tpu.dot_dimension_numbers<[1], [0], [0], [1], [0, 0, 1, 1], [], []>} : vector<8x32xf32>, vector<32x896xf32>, vector<8x896xf32> -> vector<8x896xf32>
    %c0_132 = arith.constant 0 : index
    %c0_133 = arith.constant 0 : index
    %183 = vector.load %arg8[%c0_132, %c0_133] : memref<1x896xf32, #tpu.memory_space<vmem>>, vector<1x896xf32>
    %184 = vector.broadcast %183 : vector<1x896xf32> to vector<8x896xf32>
    %185 = arith.addf %182, %184 : vector<8x896xf32>
    %186 = tpu.iota {dimensions = array<i32: 1>} : vector<8x896xi32>
    %cst_134 = arith.constant dense<0xFF800000> : vector<8xf32>
    %187 = vector.multi_reduction <maximumf>, %185, %cst_134 [1] : vector<8x896xf32> to vector<8xf32>
    %188 = vector.shape_cast %187 : vector<8xf32> to vector<8x1xf32>
    %189 = vector.broadcast %188 : vector<8x1xf32> to vector<8x896xf32>
    %190 = arith.cmpf oeq, %185, %189 : vector<8x896xf32>
    %c1073741824_i32 = arith.constant 1073741824 : i32
    %191 = vector.broadcast %c1073741824_i32 : i32 to vector<8x896xi32>
    %192 = arith.select %190, %186, %191 : vector<8x896xi1>, vector<8x896xi32>
    %cst_135 = arith.constant dense<2147483647> : vector<8xi32>
    %193 = vector.multi_reduction <minsi>, %192, %cst_135 [1] : vector<8x896xi32> to vector<8xi32>
    %194 = vector.shape_cast %193 : vector<8xi32> to vector<8x1xi32>
    %195 = tpu.iota {dimensions = array<i32: 0>} : vector<8x8xi32>
    %196 = tpu.iota {dimensions = array<i32: 1>} : vector<8x8xi32>
    %197 = arith.cmpi eq, %195, %196 : vector<8x8xi32>
    %c0_i32_136 = arith.constant 0 : i32
    %198 = vector.shape_cast %194 : vector<8x1xi32> to vector<8x1xi32>
    %199 = vector.broadcast %198 : vector<8x1xi32> to vector<8x8xi32>
    %200 = vector.broadcast %c0_i32_136 : i32 to vector<8x8xi32>
    %201 = arith.select %197, %199, %200 : vector<8x8xi1>, vector<8x8xi32>
    %cst_137 = arith.constant dense<0> : vector<8xi32>
    %202 = vector.multi_reduction <add>, %201, %cst_137 [0] : vector<8x8xi32> to vector<8xi32>
    %203 = vector.shape_cast %202 : vector<8xi32> to vector<1x8xi32>
    %c0_138 = arith.constant 0 : index
    %c0_139 = arith.constant 0 : index
    %204 = vector.load %arg9[%c0_138, %c0_139] : memref<1x8xi32, #tpu.memory_space<vmem>>, vector<1x8xi32>
    tpu.vector_store %arg9[%c0_138, %c0_139], %203 {strides = array<i32>} : memref<1x8xi32, #tpu.memory_space<vmem>>, vector<1x8xi32>,
    return
  }
}

</mosaic_0001>

<llo_original>
// kernel: tpu_custom_call.1
$region0: #{tpu_custom_call.1}
  #allocation0 [shape = 'u32[]', space=smem, size = 0x4, offset = 0x4, fixed_abs, tag = 'smem constant byte address 0x4 - core index']
  #allocation1 [shape = 'u32[144,128]{1,0:T(1,128)}', space=vmem, size = 0x12000, scoped, tag = 'internal scratch']
  #allocation2 [shape = 'f32[16,64]{1,0:T(8,128)}', space=vmem, size = 0x2000, scoped, tag = 'scratch operand']
  #allocation3 [shape = 's32[16]{0}', space=sflag, size = 0x40, scoped, tag = 'scratch operand']
  #allocation8 [shape = 's32[]', space=sflag, size = 0x4, offset = 0, fixed_abs, tag = 'sflag constant byte address 0x0 - dummy sync flag']
  #allocation9 [shape = 's32[]', space=sflag, size = 0x4, offset = 0, fixed_abs, tag = 'sflag constant byte address 0x0 - dummy sync flag']
  #allocation10 [shape = 's32[]', space=sflag, size = 0x4, offset = 0, fixed_abs, tag = 'sflag constant byte address 0x0 - dummy sync flag']
  #allocation11 [shape = 's32[]', space=sflag, size = 0x4, offset = 0, fixed_abs, tag = 'sflag constant byte address 0x0 - dummy sync flag']
  #allocation12 [shape = 's32[]', space=sflag, size = 0x4, offset = 0, fixed_abs, tag = 'sflag constant byte address 0x0 - dummy sync flag']
  #allocation13 [shape = 's32[]', space=sflag, size = 0x4, offset = 0, fixed_abs, tag = 'sflag constant byte address 0x0 - dummy sync flag']
  #allocation14 [shape = 's32[]', space=sflag, size = 0x4, offset = 0, fixed_abs, tag = 'sflag constant byte address 0x0 - dummy sync flag']
  #allocation15 [shape = 's32[]', space=sflag, size = 0x4, offset = 0, fixed_abs, tag = 'sflag constant byte address 0x0 - dummy sync flag']
  #allocation16 [shape = 's32[]', space=sflag, size = 0x4, offset = 0, fixed_abs, tag = 'sflag constant byte address 0x0 - dummy sync flag']
  #allocation17 [shape = 's32[]', space=sflag, size = 0x4, offset = 0, fixed_abs, tag = 'sflag constant byte address 0x0 - dummy sync flag']
  #allocation18 [shape = 's32[]', space=sflag, size = 0x4, offset = 0, fixed_abs, tag = 'sflag constant byte address 0x0 - dummy sync flag']
  #allocation19 [shape = 's32[]', space=sflag, size = 0x4, offset = 0, fixed_abs, tag = 'sflag constant byte address 0x0 - dummy sync flag']
  #allocation20 [shape = 's32[]', space=sflag, size = 0x4, offset = 0, fixed_abs, tag = 'sflag constant byte address 0x0 - dummy sync flag']
  #allocation21 [shape = 's32[]', space=sflag, size = 0x4, offset = 0, fixed_abs, tag = 'sflag constant byte address 0x0 - dummy sync flag']
  #allocation22 [shape = 's32[]', space=sflag, size = 0x4, offset = 0, fixed_abs, tag = 'sflag constant byte address 0x0 - dummy sync flag']
  #allocation23 [shape = 's32[]', space=sflag, size = 0x4, offset = 0, fixed_abs, tag = 'sflag constant byte address 0x0 - dummy sync flag']
  %s0 = inlined_call_operand.vmem [shape: s32[16], index: 0, kind: input, shape index: {}]
  %s1 = inlined_call_operand.vmem [shape: s32[8,1], index: 1, kind: input, shape index: {}]
  %s2 = inlined_call_operand.vmem [shape: f32[5400,64], index: 2, kind: input, shape index: {}]
  %s3 = inlined_call_operand.vmem [shape: f32[64,256], index: 3, kind: input, shape index: {}]
  %s4 = inlined_call_operand.vmem [shape: f32[1,256], index: 4, kind: input, shape index: {}]
  %s5 = inlined_call_operand.vmem [shape: f32[64,32], index: 5, kind: input, shape index: {}]
  %s6 = inlined_call_operand.vmem [shape: f32[1,32], index: 6, kind: input, shape index: {}]
  %s7 = inlined_call_operand.vmem [shape: f32[32,896], index: 7, kind: input, shape index: {}]
  %s8 = inlined_call_operand.vmem [shape: f32[1,896], index: 8, kind: input, shape index: {}]
  %s9 = inlined_call_operand.hbm [shape: s32[1,8], index: 9, kind: output, shape index: {}]
  %s10 = sld [smem:[#allocation0]]
  $region526: #{tpu_custom_call.1} parent=0
    _
  %s12 = ssub.s32 1, %s10
  %s13 = scalar_select 0, %s12, %s10
  $region1: #{tpu_custom_call.1} parent=0
    #allocation4 [shape = 'u8[512]{0}', space=smem, size = 0x200, scoped, tag = 'input window, operand 0, single buffered']
    #allocation5 [shape = 's32[1]{0}', space=sflag, size = 0x4, scoped, tag = 'scoped memory for tpu_custom_call.1']
    #allocation6 [shape = 's32[1]{0}', space=sflag, size = 0x4, scoped, tag = 'scoped memory for tpu_custom_call.1']
    #allocation7 [shape = 'u8[512]{0}', space=vmem, size = 0x400, scoped, tag = 'output window, operand 0, single buffered']
    %14 = vsyncpa [#allocation6], 0
    %15 = vsyncpa [#allocation5], 0
    // Predicated region
    $region2: #{tpu_custom_call.1} parent=1 // pred_check
      _
    $region3: #{tpu_custom_call.1} parent=1 // pred_check_branch
      %17 = sbr.rel (0) target = $region5
    $region4: #{tpu_custom_call.1} parent=1 // pred_region
      %s19 = ssub.s32 16, 16
      %20 = vsyncadd [#allocation6], %s19
      %s22 = sshll.u32 %s0, 4
      %s23 = int_to_ptr.vmem [resolvable:$true] %s22
      %25 = dma.vmem_to_smem %s23, 16, [#allocation4], [#allocation6]
    $region5: #{tpu_custom_call.1} parent=1 // pred_fallthru
      _
    // Predicated region
    $region6: #{tpu_custom_call.1} parent=1 // pred_check
      _
    $region7: #{tpu_custom_call.1} parent=1 // pred_check_branch
      %27 = sbr.rel (0) target = $region9
    $region8: #{tpu_custom_call.1} parent=1 // pred_region
      _
    $region9: #{tpu_custom_call.1} parent=1 // pred_fallthru
      _
    // Predicated region
    $region10: #{tpu_custom_call.1} parent=1 // pred_check
      _
    $region11: #{tpu_custom_call.1} parent=1 // pred_check_branch
      %29 = sbr.rel (0) target = $region13
    $region12: #{tpu_custom_call.1} parent=1 // pred_region
      _
    $region13: #{tpu_custom_call.1} parent=1 // pred_fallthru
      _
    // Predicated region
    $region14: #{tpu_custom_call.1} parent=1 // pred_check
      _
    $region15: #{tpu_custom_call.1} parent=1 // pred_check_branch
      %31 = sbr.rel (0) target = $region17
    $region16: #{tpu_custom_call.1} parent=1 // pred_region
      _
    $region17: #{tpu_custom_call.1} parent=1 // pred_fallthru
      _
    // Predicated region
    $region18: #{tpu_custom_call.1} parent=1 // pred_check
      _
    $region19: #{tpu_custom_call.1} parent=1 // pred_check_branch
      %33 = sbr.rel (0) target = $region21
    $region20: #{tpu_custom_call.1} parent=1 // pred_region
      _
    $region21: #{tpu_custom_call.1} parent=1 // pred_fallthru
      _
    // Predicated region
    $region22: #{tpu_custom_call.1} parent=1 // pred_check
      _
    $region23: #{tpu_custom_call.1} parent=1 // pred_check_branch
      %35 = sbr.rel (0) target = $region25
    $region24: #{tpu_custom_call.1} parent=1 // pred_region
      _
    $region25: #{tpu_custom_call.1} parent=1 // pred_fallthru
      _
    // Predicated region
    $region26: #{tpu_custom_call.1} parent=1 // pred_check
      _
    $region27: #{tpu_custom_call.1} parent=1 // pred_check_branch
      %37 = sbr.rel (0) target = $region29
    $region28: #{tpu_custom_call.1} parent=1 // pred_region
      _
    $region29: #{tpu_custom_call.1} parent=1 // pred_fallthru
      _
    // Predicated region
    $region30: #{tpu_custom_call.1} parent=1 // pred_check
      _
    $region31: #{tpu_custom_call.1} parent=1 // pred_check_branch
      %39 = sbr.rel (0) target = $region33
    $region32: #{tpu_custom_call.1} parent=1 // pred_region
      _
    $region33: #{tpu_custom_call.1} parent=1 // pred_fallthru
      _
    // Predicated region
    $region34: #{tpu_custom_call.1} parent=1 // pred_check
      _
    $region35: #{tpu_custom_call.1} parent=1 // pred_check_branch
      %41 = sbr.rel (0) target = $region37
    $region36: #{tpu_custom_call.1} parent=1 // pred_region
      %42 = dma.done [#allocation6], 16
    $region37: #{tpu_custom_call.1} parent=1 // pred_fallthru
      _
    %43 = sfence
    %s44 = sld [smem:[#allocation4]]
    %s45 = sld [smem:[#allocation4 + $0x1]]
    %s46 = sld [smem:[#allocation4 + $0x2]]
    %s47 = sld [smem:[#allocation4 + $0x3]]
    %s48 = sld [smem:[#allocation4 + $0x4]]
    %s49 = sld [smem:[#allocation4 + $0x5]]
    %s50 = sld [smem:[#allocation4 + $0x6]]
    %s51 = sld [smem:[#allocation4 + $0x7]]
    %s52 = sld [smem:[#allocation4 + $0x8]]
    %s53 = sld [smem:[#allocation4 + $0x9]]
    %s54 = sld [smem:[#allocation4 + $0xa]]
    %s55 = sld [smem:[#allocation4 + $0xb]]
    %s56 = sld [smem:[#allocation4 + $0xc]]
    %s57 = sld [smem:[#allocation4 + $0xd]]
    %s58 = sld [smem:[#allocation4 + $0xe]]
    %s59 = sld [smem:[#allocation4 + $0xf]]
    %s60 = scalar_lea.vmem %s2, %s44
    %p62 = scmp.lt.u32.totalorder 1, 8
    %p63 = pneg %p62
    // Predicated region
    $region38: #{tpu_custom_call.1} parent=1 // pred_check
      _
    $region39: #{tpu_custom_call.1} parent=1 // pred_check_branch
      %65 = sbr.rel (%p62) target = $region41
    $region40: #{tpu_custom_call.1} parent=1 // pred_region
      %s81 = sand.u32 1, 7
      %p82 = scmp.eq.s32.totalorder %s81, 0
      %p83 = pneg %p82
      // Predicated region
      $region53: #{tpu_custom_call.1} parent=40 // pred_check
        _
      $region54: #{tpu_custom_call.1} parent=40 // pred_check_branch
        %85 = sbr.rel (%p82) target = $region56
      $region55: #{tpu_custom_call.1} parent=40 // pred_region
        %s86 = sand.u32 1, 7
        %s87 = ssub.s32 1, %s86
        %s88 = scalar_lea.vmem %s60, %s87
        %s89 = ssub.s32 1, %s86
        %s90 = scalar_lea.vmem [#allocation2], %s89
        %s91 = sshll.u32 1, %s86
        %s92 = ssub.s32 %s91, 1
        loop: start=0, step=1, limit=1
        $region57: #{tpu_custom_call.1} parent=55 // loop_pre_header
          _
        $region58: #{tpu_custom_call.1} parent=55 // loop_header
          %s94 = sphi 0, %s98
          %p95 = scmp.ge.s32.totalorder %s94, 1
          %s99 = sphi %s88, %s88
          %s100 = sphi %s90, %s90
        $region59: #{tpu_custom_call.1} parent=55 // loop_header_branch
          %97 = sbr.rel (%p95) target = $region63
        $region60: #{tpu_custom_call.1} parent=55 // loop_body
          %v101 = vld [vmem:[%s99] sm:%s92]
          %102 = vst [vmem:[%s100] sm:%s92] %v101
        $region61: #{tpu_custom_call.1} parent=55 // loop_footer
          %s98 = sadd.s32 1, %s94
        $region62: #{tpu_custom_call.1} parent=55 // loop_footer_branch
          %93 = sbr.rel target = $region58
        $region63: #{tpu_custom_call.1} parent=55 // loop_exit
          _
      $region56: #{tpu_custom_call.1} parent=40 // pred_fallthru
        _
    $region41: #{tpu_custom_call.1} parent=1 // pred_fallthru
      _
    // Predicated region
    $region42: #{tpu_custom_call.1} parent=1 // pred_check
      %p66 = pneg %p62
    $region43: #{tpu_custom_call.1} parent=1 // pred_check_branch
      %68 = sbr.rel (%p66) target = $region45
    $region44: #{tpu_custom_call.1} parent=1 // pred_region
      %s69 = sshll.u32 1, 1
      %s70 = ssub.s32 %s69, 1
      loop: start=0, step=1, limit=1
      $region46: #{tpu_custom_call.1} parent=44 // loop_pre_header
        _
      $region47: #{tpu_custom_call.1} parent=44 // loop_header
        %s72 = sphi 0, %s76
        %p73 = scmp.ge.s32.totalorder %s72, 1
        %s77 = sphi %s60, %s60
        %s78 = sphi [#allocation2], [#allocation2]
      $region48: #{tpu_custom_call.1} parent=44 // loop_header_branch
        %75 = sbr.rel (%p73) target = $region52
      $region49: #{tpu_custom_call.1} parent=44 // loop_body
        %v79 = vld [vmem:[%s77] sm:%s70]
        %80 = vst [vmem:[%s78] sm:%s70] %v79
      $region50: #{tpu_custom_call.1} parent=44 // loop_footer
        %s76 = sadd.s32 1, %s72
      $region51: #{tpu_custom_call.1} parent=44 // loop_footer_branch
        %71 = sbr.rel target = $region47
      $region52: #{tpu_custom_call.1} parent=44 // loop_exit
        _
    $region45: #{tpu_custom_call.1} parent=1 // pred_fallthru
      _
    // Predicated region
    $region64: #{tpu_custom_call.1} parent=1 // pred_check
      _
    $region65: #{tpu_custom_call.1} parent=1 // pred_check_branch
      %105 = sbr.rel (0) target = $region67
    $region66: #{tpu_custom_call.1} parent=1 // pred_region
      %106 = vsyncadd [#allocation3], 16
    $region67: #{tpu_custom_call.1} parent=1 // pred_fallthru
      _
    %s107 = scalar_lea.vmem %s2, %s45
    %s108 = scalar_lea.vmem [#allocation2], 1
    %s109 = scalar_lea.sflag [#allocation3], 1
    %p111 = scmp.lt.u32.totalorder 1, 8
    %p112 = pneg %p111
    // Predicated region
    $region68: #{tpu_custom_call.1} parent=1 // pred_check
      _
    $region69: #{tpu_custom_call.1} parent=1 // pred_check_branch
      %114 = sbr.rel (%p111) target = $region71
    $region70: #{tpu_custom_call.1} parent=1 // pred_region
      %s130 = sand.u32 1, 7
      %p131 = scmp.eq.s32.totalorder %s130, 0
      %p132 = pneg %p131
      // Predicated region
      $region83: #{tpu_custom_call.1} parent=70 // pred_check
        _
      $region84: #{tpu_custom_call.1} parent=70 // pred_check_branch
        %134 = sbr.rel (%p131) target = $region86
      $region85: #{tpu_custom_call.1} parent=70 // pred_region
        %s135 = sand.u32 1, 7
        %s136 = ssub.s32 1, %s135
        %s137 = scalar_lea.vmem %s107, %s136
        %s138 = ssub.s32 1, %s135
        %s139 = scalar_lea.vmem %s108, %s138 [#allocation2]
        %s140 = sshll.u32 1, %s135
        %s141 = ssub.s32 %s140, 1
        loop: start=0, step=1, limit=1
        $region87: #{tpu_custom_call.1} parent=85 // loop_pre_header
          _
        $region88: #{tpu_custom_call.1} parent=85 // loop_header
          %s143 = sphi 0, %s147
          %p144 = scmp.ge.s32.totalorder %s143, 1
          %s148 = sphi %s137, %s137
          %s149 = sphi %s139, %s139
        $region89: #{tpu_custom_call.1} parent=85 // loop_header_branch
          %146 = sbr.rel (%p144) target = $region93
        $region90: #{tpu_custom_call.1} parent=85 // loop_body
          %v150 = vld [vmem:[%s148] sm:%s141]
          %151 = vst [vmem:[%s149] sm:%s141] %v150
        $region91: #{tpu_custom_call.1} parent=85 // loop_footer
          %s147 = sadd.s32 1, %s143
        $region92: #{tpu_custom_call.1} parent=85 // loop_footer_branch
          %142 = sbr.rel target = $region88
        $region93: #{tpu_custom_call.1} parent=85 // loop_exit
          _
      $region86: #{tpu_custom_call.1} parent=70 // pred_fallthru
        _
    $region71: #{tpu_custom_call.1} parent=1 // pred_fallthru
      _
    // Predicated region
    $region72: #{tpu_custom_call.1} parent=1 // pred_check
      %p115 = pneg %p111
    $region73: #{tpu_custom_call.1} parent=1 // pred_check_branch
      %117 = sbr.rel (%p115) target = $region75
    $region74: #{tpu_custom_call.1} parent=1 // pred_region
      %s118 = sshll.u32 1, 1
      %s119 = ssub.s32 %s118, 1
      loop: start=0, step=1, limit=1
      $region76: #{tpu_custom_call.1} parent=74 // loop_pre_header
        _
      $region77: #{tpu_custom_call.1} parent=74 // loop_header
        %s121 = sphi 0, %s125
        %p122 = scmp.ge.s32.totalorder %s121, 1
        %s126 = sphi %s107, %s107
        %s127 = sphi %s108, %s108
      $region78: #{tpu_custom_call.1} parent=74 // loop_header_branch
        %124 = sbr.rel (%p122) target = $region82
      $region79: #{tpu_custom_call.1} parent=74 // loop_body
        %v128 = vld [vmem:[%s126] sm:%s119]
        %129 = vst [vmem:[%s127] sm:%s119] %v128
      $region80: #{tpu_custom_call.1} parent=74 // loop_footer
        %s125 = sadd.s32 1, %s121
      $region81: #{tpu_custom_call.1} parent=74 // loop_footer_branch
        %120 = sbr.rel target = $region77
      $region82: #{tpu_custom_call.1} parent=74 // loop_exit
        _
    $region75: #{tpu_custom_call.1} parent=1 // pred_fallthru
      _
    // Predicated region
    $region94: #{tpu_custom_call.1} parent=1 // pred_check
      _
    $region95: #{tpu_custom_call.1} parent=1 // pred_check_branch
      %154 = sbr.rel (0) target = $region97
    $region96: #{tpu_custom_call.1} parent=1 // pred_region
      %155 = vsyncadd %s109, 16
    $region97: #{tpu_custom_call.1} parent=1 // pred_fallthru
      _
    %s156 = scalar_lea.vmem %s2, %s46
    %s157 = scalar_lea.vmem [#allocation2], 2
    %s158 = scalar_lea.sflag [#allocation3], 2
    %p160 = scmp.lt.u32.totalorder 1, 8
    %p161 = pneg %p160
    // Predicated region
    $region98: #{tpu_custom_call.1} parent=1 // pred_check
      _
    $region99: #{tpu_custom_call.1} parent=1 // pred_check_branch
      %163 = sbr.rel (%p160) target = $region101
    $region100: #{tpu_custom_call.1} parent=1 // pred_region
      %s179 = sand.u32 1, 7
      %p180 = scmp.eq.s32.totalorder %s179, 0
      %p181 = pneg %p180
      // Predicated region
      $region113: #{tpu_custom_call.1} parent=100 // pred_check
        _
      $region114: #{tpu_custom_call.1} parent=100 // pred_check_branch
        %183 = sbr.rel (%p180) target = $region116
      $region115: #{tpu_custom_call.1} parent=100 // pred_region
        %s184 = sand.u32 1, 7
        %s185 = ssub.s32 1, %s184
        %s186 = scalar_lea.vmem %s156, %s185
        %s187 = ssub.s32 1, %s184
        %s188 = scalar_lea.vmem %s157, %s187 [#allocation2]
        %s189 = sshll.u32 1, %s184
        %s190 = ssub.s32 %s189, 1
        loop: start=0, step=1, limit=1
        $region117: #{tpu_custom_call.1} parent=115 // loop_pre_header
          _
        $region118: #{tpu_custom_call.1} parent=115 // loop_header
          %s192 = sphi 0, %s196
          %p193 = scmp.ge.s32.totalorder %s192, 1
          %s197 = sphi %s186, %s186
          %s198 = sphi %s188, %s188
        $region119: #{tpu_custom_call.1} parent=115 // loop_header_branch
          %195 = sbr.rel (%p193) target = $region123
        $region120: #{tpu_custom_call.1} parent=115 // loop_body
          %v199 = vld [vmem:[%s197] sm:%s190]
          %200 = vst [vmem:[%s198] sm:%s190] %v199
        $region121: #{tpu_custom_call.1} parent=115 // loop_footer
          %s196 = sadd.s32 1, %s192
        $region122: #{tpu_custom_call.1} parent=115 // loop_footer_branch
          %191 = sbr.rel target = $region118
        $region123: #{tpu_custom_call.1} parent=115 // loop_exit
          _
      $region116: #{tpu_custom_call.1} parent=100 // pred_fallthru
        _
    $region101: #{tpu_custom_call.1} parent=1 // pred_fallthru
      _
    // Predicated region
    $region102: #{tpu_custom_call.1} parent=1 // pred_check
      %p164 = pneg %p160
    $region103: #{tpu_custom_call.1} parent=1 // pred_check_branch
      %166 = sbr.rel (%p164) target = $region105
    $region104: #{tpu_custom_call.1} parent=1 // pred_region
      %s167 = sshll.u32 1, 1
      %s168 = ssub.s32 %s167, 1
      loop: start=0, step=1, limit=1
      $region106: #{tpu_custom_call.1} parent=104 // loop_pre_header
        _
      $region107: #{tpu_custom_call.1} parent=104 // loop_header
        %s170 = sphi 0, %s174
        %p171 = scmp.ge.s32.totalorder %s170, 1
        %s175 = sphi %s156, %s156
        %s176 = sphi %s157, %s157
      $region108: #{tpu_custom_call.1} parent=104 // loop_header_branch
        %173 = sbr.rel (%p171) target = $region112
      $region109: #{tpu_custom_call.1} parent=104 // loop_body
        %v177 = vld [vmem:[%s175] sm:%s168]
        %178 = vst [vmem:[%s176] sm:%s168] %v177
      $region110: #{tpu_custom_call.1} parent=104 // loop_footer
        %s174 = sadd.s32 1, %s170
      $region111: #{tpu_custom_call.1} parent=104 // loop_footer_branch
        %169 = sbr.rel target = $region107
      $region112: #{tpu_custom_call.1} parent=104 // loop_exit
        _
    $region105: #{tpu_custom_call.1} parent=1 // pred_fallthru
      _
    // Predicated region
    $region124: #{tpu_custom_call.1} parent=1 // pred_check
      _
    $region125: #{tpu_custom_call.1} parent=1 // pred_check_branch
      %203 = sbr.rel (0) target = $region127
    $region126: #{tpu_custom_call.1} parent=1 // pred_region
      %204 = vsyncadd %s158, 16
    $region127: #{tpu_custom_call.1} parent=1 // pred_fallthru
      _
    %s205 = scalar_lea.vmem %s2, %s47
    %s206 = scalar_lea.vmem [#allocation2], 3
    %s207 = scalar_lea.sflag [#allocation3], 3
    %p209 = scmp.lt.u32.totalorder 1, 8
    %p210 = pneg %p209
    // Predicated region
    $region128: #{tpu_custom_call.1} parent=1 // pred_check
      _
    $region129: #{tpu_custom_call.1} parent=1 // pred_check_branch
      %212 = sbr.rel (%p209) target = $region131
    $region130: #{tpu_custom_call.1} parent=1 // pred_region
      %s228 = sand.u32 1, 7
      %p229 = scmp.eq.s32.totalorder %s228, 0
      %p230 = pneg %p229
      // Predicated region
      $region143: #{tpu_custom_call.1} parent=130 // pred_check
        _
      $region144: #{tpu_custom_call.1} parent=130 // pred_check_branch
        %232 = sbr.rel (%p229) target = $region146
      $region145: #{tpu_custom_call.1} parent=130 // pred_region
        %s233 = sand.u32 1, 7
        %s234 = ssub.s32 1, %s233
        %s235 = scalar_lea.vmem %s205, %s234
        %s236 = ssub.s32 1, %s233
        %s237 = scalar_lea.vmem %s206, %s236 [#allocation2]
        %s238 = sshll.u32 1, %s233
        %s239 = ssub.s32 %s238, 1
        loop: start=0, step=1, limit=1
        $region147: #{tpu_custom_call.1} parent=145 // loop_pre_header
          _
        $region148: #{tpu_custom_call.1} parent=145 // loop_header
          %s241 = sphi 0, %s245
          %p242 = scmp.ge.s32.totalorder %s241, 1
          %s246 = sphi %s235, %s235
          %s247 = sphi %s237, %s237
        $region149: #{tpu_custom_call.1} parent=145 // loop_header_branch
          %244 = sbr.rel (%p242) target = $region153
        $region150: #{tpu_custom_call.1} parent=145 // loop_body
          %v248 = vld [vmem:[%s246] sm:%s239]
          %249 = vst [vmem:[%s247] sm:%s239] %v248
        $region151: #{tpu_custom_call.1} parent=145 // loop_footer
          %s245 = sadd.s32 1, %s241
        $region152: #{tpu_custom_call.1} parent=145 // loop_footer_branch
          %240 = sbr.rel target = $region148
        $region153: #{tpu_custom_call.1} parent=145 // loop_exit
          _
      $region146: #{tpu_custom_call.1} parent=130 // pred_fallthru
        _
    $region131: #{tpu_custom_call.1} parent=1 // pred_fallthru
      _
    // Predicated region
    $region132: #{tpu_custom_call.1} parent=1 // pred_check
      %p213 = pneg %p209
    $region133: #{tpu_custom_call.1} parent=1 // pred_check_branch
      %215 = sbr.rel (%p213) target = $region135
    $region134: #{tpu_custom_call.1} parent=1 // pred_region
      %s216 = sshll.u32 1, 1
      %s217 = ssub.s32 %s216, 1
      loop: start=0, step=1, limit=1
      $region136: #{tpu_custom_call.1} parent=134 // loop_pre_header
        _
      $region137: #{tpu_custom_call.1} parent=134 // loop_header
        %s219 = sphi 0, %s223
        %p220 = scmp.ge.s32.totalorder %s219, 1
        %s224 = sphi %s205, %s205
        %s225 = sphi %s206, %s206
      $region138: #{tpu_custom_call.1} parent=134 // loop_header_branch
        %222 = sbr.rel (%p220) target = $region142
      $region139: #{tpu_custom_call.1} parent=134 // loop_body
        %v226 = vld [vmem:[%s224] sm:%s217]
        %227 = vst [vmem:[%s225] sm:%s217] %v226
      $region140: #{tpu_custom_call.1} parent=134 // loop_footer
        %s223 = sadd.s32 1, %s219
      $region141: #{tpu_custom_call.1} parent=134 // loop_footer_branch
        %218 = sbr.rel target = $region137
      $region142: #{tpu_custom_call.1} parent=134 // loop_exit
        _
    $region135: #{tpu_custom_call.1} parent=1 // pred_fallthru
      _
    // Predicated region
    $region154: #{tpu_custom_call.1} parent=1 // pred_check
      _
    $region155: #{tpu_custom_call.1} parent=1 // pred_check_branch
      %252 = sbr.rel (0) target = $region157
    $region156: #{tpu_custom_call.1} parent=1 // pred_region
      %253 = vsyncadd %s207, 16
    $region157: #{tpu_custom_call.1} parent=1 // pred_fallthru
      _
    %s254 = scalar_lea.vmem %s2, %s48
    %s255 = scalar_lea.vmem [#allocation2], 4
    %s256 = scalar_lea.sflag [#allocation3], 4
    %p258 = scmp.lt.u32.totalorder 1, 8
    %p259 = pneg %p258
    // Predicated region
    $region158: #{tpu_custom_call.1} parent=1 // pred_check
      _
    $region159: #{tpu_custom_call.1} parent=1 // pred_check_branch
      %261 = sbr.rel (%p258) target = $region161
    $region160: #{tpu_custom_call.1} parent=1 // pred_region
      %s277 = sand.u32 1, 7
      %p278 = scmp.eq.s32.totalorder %s277, 0
      %p279 = pneg %p278
      // Predicated region
      $region173: #{tpu_custom_call.1} parent=160 // pred_check
        _
      $region174: #{tpu_custom_call.1} parent=160 // pred_check_branch
        %281 = sbr.rel (%p278) target = $region176
      $region175: #{tpu_custom_call.1} parent=160 // pred_region
        %s282 = sand.u32 1, 7
        %s283 = ssub.s32 1, %s282
        %s284 = scalar_lea.vmem %s254, %s283
        %s285 = ssub.s32 1, %s282
        %s286 = scalar_lea.vmem %s255, %s285 [#allocation2]
        %s287 = sshll.u32 1, %s282
        %s288 = ssub.s32 %s287, 1
        loop: start=0, step=1, limit=1
        $region177: #{tpu_custom_call.1} parent=175 // loop_pre_header
          _
        $region178: #{tpu_custom_call.1} parent=175 // loop_header
          %s290 = sphi 0, %s294
          %p291 = scmp.ge.s32.totalorder %s290, 1
          %s295 = sphi %s284, %s284
          %s296 = sphi %s286, %s286
        $region179: #{tpu_custom_call.1} parent=175 // loop_header_branch
          %293 = sbr.rel (%p291) target = $region183
        $region180: #{tpu_custom_call.1} parent=175 // loop_body
          %v297 = vld [vmem:[%s295] sm:%s288]
          %298 = vst [vmem:[%s296] sm:%s288] %v297
        $region181: #{tpu_custom_call.1} parent=175 // loop_footer
          %s294 = sadd.s32 1, %s290
        $region182: #{tpu_custom_call.1} parent=175 // loop_footer_branch
          %289 = sbr.rel target = $region178
        $region183: #{tpu_custom_call.1} parent=175 // loop_exit
          _
      $region176: #{tpu_custom_call.1} parent=160 // pred_fallthru
        _
    $region161: #{tpu_custom_call.1} parent=1 // pred_fallthru
      _
    // Predicated region
    $region162: #{tpu_custom_call.1} parent=1 // pred_check
      %p262 = pneg %p258
    $region163: #{tpu_custom_call.1} parent=1 // pred_check_branch
      %264 = sbr.rel (%p262) target = $region165
    $region164: #{tpu_custom_call.1} parent=1 // pred_region
      %s265 = sshll.u32 1, 1
      %s266 = ssub.s32 %s265, 1
      loop: start=0, step=1, limit=1
      $region166: #{tpu_custom_call.1} parent=164 // loop_pre_header
        _
      $region167: #{tpu_custom_call.1} parent=164 // loop_header
        %s268 = sphi 0, %s272
        %p269 = scmp.ge.s32.totalorder %s268, 1
        %s273 = sphi %s254, %s254
        %s274 = sphi %s255, %s255
      $region168: #{tpu_custom_call.1} parent=164 // loop_header_branch
        %271 = sbr.rel (%p269) target = $region172
      $region169: #{tpu_custom_call.1} parent=164 // loop_body
        %v275 = vld [vmem:[%s273] sm:%s266]
        %276 = vst [vmem:[%s274] sm:%s266] %v275
      $region170: #{tpu_custom_call.1} parent=164 // loop_footer
        %s272 = sadd.s32 1, %s268
      $region171: #{tpu_custom_call.1} parent=164 // loop_footer_branch
        %267 = sbr.rel target = $region167
      $region172: #{tpu_custom_call.1} parent=164 // loop_exit
        _
    $region165: #{tpu_custom_call.1} parent=1 // pred_fallthru
      _
    // Predicated region
    $region184: #{tpu_custom_call.1} parent=1 // pred_check
      _
    $region185: #{tpu_custom_call.1} parent=1 // pred_check_branch
      %301 = sbr.rel (0) target = $region187
    $region186: #{tpu_custom_call.1} parent=1 // pred_region
      %302 = vsyncadd %s256, 16
    $region187: #{tpu_custom_call.1} parent=1 // pred_fallthru
      _
    %s303 = scalar_lea.vmem %s2, %s49
    %s304 = scalar_lea.vmem [#allocation2], 5
    %s305 = scalar_lea.sflag [#allocation3], 5
    %p307 = scmp.lt.u32.totalorder 1, 8
    %p308 = pneg %p307
    // Predicated region
    $region188: #{tpu_custom_call.1} parent=1 // pred_check
      _
    $region189: #{tpu_custom_call.1} parent=1 // pred_check_branch
      %310 = sbr.rel (%p307) target = $region191
    $region190: #{tpu_custom_call.1} parent=1 // pred_region
      %s326 = sand.u32 1, 7
      %p327 = scmp.eq.s32.totalorder %s326, 0
      %p328 = pneg %p327
      // Predicated region
      $region203: #{tpu_custom_call.1} parent=190 // pred_check
        _
      $region204: #{tpu_custom_call.1} parent=190 // pred_check_branch
        %330 = sbr.rel (%p327) target = $region206
      $region205: #{tpu_custom_call.1} parent=190 // pred_region
        %s331 = sand.u32 1, 7
        %s332 = ssub.s32 1, %s331
        %s333 = scalar_lea.vmem %s303, %s332
        %s334 = ssub.s32 1, %s331
        %s335 = scalar_lea.vmem %s304, %s334 [#allocation2]
        %s336 = sshll.u32 1, %s331
        %s337 = ssub.s32 %s336, 1
        loop: start=0, step=1, limit=1
        $region207: #{tpu_custom_call.1} parent=205 // loop_pre_header
          _
        $region208: #{tpu_custom_call.1} parent=205 // loop_header
          %s339 = sphi 0, %s343
          %p340 = scmp.ge.s32.totalorder %s339, 1
          %s344 = sphi %s333, %s333
          %s345 = sphi %s335, %s335
        $region209: #{tpu_custom_call.1} parent=205 // loop_header_branch
          %342 = sbr.rel (%p340) target = $region213
        $region210: #{tpu_custom_call.1} parent=205 // loop_body
          %v346 = vld [vmem:[%s344] sm:%s337]
          %347 = vst [vmem:[%s345] sm:%s337] %v346
        $region211: #{tpu_custom_call.1} parent=205 // loop_footer
          %s343 = sadd.s32 1, %s339
        $region212: #{tpu_custom_call.1} parent=205 // loop_footer_branch
          %338 = sbr.rel target = $region208
        $region213: #{tpu_custom_call.1} parent=205 // loop_exit
          _
      $region206: #{tpu_custom_call.1} parent=190 // pred_fallthru
        _
    $region191: #{tpu_custom_call.1} parent=1 // pred_fallthru
      _
    // Predicated region
    $region192: #{tpu_custom_call.1} parent=1 // pred_check
      %p311 = pneg %p307
    $region193: #{tpu_custom_call.1} parent=1 // pred_check_branch
      %313 = sbr.rel (%p311) target = $region195
    $region194: #{tpu_custom_call.1} parent=1 // pred_region
      %s314 = sshll.u32 1, 1
      %s315 = ssub.s32 %s314, 1
      loop: start=0, step=1, limit=1
      $region196: #{tpu_custom_call.1} parent=194 // loop_pre_header
        _
      $region197: #{tpu_custom_call.1} parent=194 // loop_header
        %s317 = sphi 0, %s321
        %p318 = scmp.ge.s32.totalorder %s317, 1
        %s322 = sphi %s303, %s303
        %s323 = sphi %s304, %s304
      $region198: #{tpu_custom_call.1} parent=194 // loop_header_branch
        %320 = sbr.rel (%p318) target = $region202
      $region199: #{tpu_custom_call.1} parent=194 // loop_body
        %v324 = vld [vmem:[%s322] sm:%s315]
        %325 = vst [vmem:[%s323] sm:%s315] %v324
      $region200: #{tpu_custom_call.1} parent=194 // loop_footer
        %s321 = sadd.s32 1, %s317
      $region201: #{tpu_custom_call.1} parent=194 // loop_footer_branch
        %316 = sbr.rel target = $region197
      $region202: #{tpu_custom_call.1} parent=194 // loop_exit
        _
    $region195: #{tpu_custom_call.1} parent=1 // pred_fallthru
      _
    // Predicated region
    $region214: #{tpu_custom_call.1} parent=1 // pred_check
      _
    $region215: #{tpu_custom_call.1} parent=1 // pred_check_branch
      %350 = sbr.rel (0) target = $region217
    $region216: #{tpu_custom_call.1} parent=1 // pred_region
      %351 = vsyncadd %s305, 16
    $region217: #{tpu_custom_call.1} parent=1 // pred_fallthru
      _
    %s352 = scalar_lea.vmem %s2, %s50
    %s353 = scalar_lea.vmem [#allocation2], 6
    %s354 = scalar_lea.sflag [#allocation3], 6
    %p356 = scmp.lt.u32.totalorder 1, 8
    %p357 = pneg %p356
    // Predicated region
    $region218: #{tpu_custom_call.1} parent=1 // pred_check
      _
    $region219: #{tpu_custom_call.1} parent=1 // pred_check_branch
      %359 = sbr.rel (%p356) target = $region221
    $region220: #{tpu_custom_call.1} parent=1 // pred_region
      %s375 = sand.u32 1, 7
      %p376 = scmp.eq.s32.totalorder %s375, 0
      %p377 = pneg %p376
      // Predicated region
      $region233: #{tpu_custom_call.1} parent=220 // pred_check
        _
      $region234: #{tpu_custom_call.1} parent=220 // pred_check_branch
        %379 = sbr.rel (%p376) target = $region236
      $region235: #{tpu_custom_call.1} parent=220 // pred_region
        %s380 = sand.u32 1, 7
        %s381 = ssub.s32 1, %s380
        %s382 = scalar_lea.vmem %s352, %s381
        %s383 = ssub.s32 1, %s380
        %s384 = scalar_lea.vmem %s353, %s383 [#allocation2]
        %s385 = sshll.u32 1, %s380
        %s386 = ssub.s32 %s385, 1
        loop: start=0, step=1, limit=1
        $region237: #{tpu_custom_call.1} parent=235 // loop_pre_header
          _
        $region238: #{tpu_custom_call.1} parent=235 // loop_header
          %s388 = sphi 0, %s392
          %p389 = scmp.ge.s32.totalorder %s388, 1
          %s393 = sphi %s382, %s382
          %s394 = sphi %s384, %s384
        $region239: #{tpu_custom_call.1} parent=235 // loop_header_branch
          %391 = sbr.rel (%p389) target = $region243
        $region240: #{tpu_custom_call.1} parent=235 // loop_body
          %v395 = vld [vmem:[%s393] sm:%s386]
          %396 = vst [vmem:[%s394] sm:%s386] %v395
        $region241: #{tpu_custom_call.1} parent=235 // loop_footer
          %s392 = sadd.s32 1, %s388
        $region242: #{tpu_custom_call.1} parent=235 // loop_footer_branch
          %387 = sbr.rel target = $region238
        $region243: #{tpu_custom_call.1} parent=235 // loop_exit
          _
      $region236: #{tpu_custom_call.1} parent=220 // pred_fallthru
        _
    $region221: #{tpu_custom_call.1} parent=1 // pred_fallthru
      _
    // Predicated region
    $region222: #{tpu_custom_call.1} parent=1 // pred_check
      %p360 = pneg %p356
    $region223: #{tpu_custom_call.1} parent=1 // pred_check_branch
      %362 = sbr.rel (%p360) target = $region225
    $region224: #{tpu_custom_call.1} parent=1 // pred_region
      %s363 = sshll.u32 1, 1
      %s364 = ssub.s32 %s363, 1
      loop: start=0, step=1, limit=1
      $region226: #{tpu_custom_call.1} parent=224 // loop_pre_header
        _
      $region227: #{tpu_custom_call.1} parent=224 // loop_header
        %s366 = sphi 0, %s370
        %p367 = scmp.ge.s32.totalorder %s366, 1
        %s371 = sphi %s352, %s352
        %s372 = sphi %s353, %s353
      $region228: #{tpu_custom_call.1} parent=224 // loop_header_branch
        %369 = sbr.rel (%p367) target = $region232
      $region229: #{tpu_custom_call.1} parent=224 // loop_body
        %v373 = vld [vmem:[%s371] sm:%s364]
        %374 = vst [vmem:[%s372] sm:%s364] %v373
      $region230: #{tpu_custom_call.1} parent=224 // loop_footer
        %s370 = sadd.s32 1, %s366
      $region231: #{tpu_custom_call.1} parent=224 // loop_footer_branch
        %365 = sbr.rel target = $region227
      $region232: #{tpu_custom_call.1} parent=224 // loop_exit
        _
    $region225: #{tpu_custom_call.1} parent=1 // pred_fallthru
      _
    // Predicated region
    $region244: #{tpu_custom_call.1} parent=1 // pred_check
      _
    $region245: #{tpu_custom_call.1} parent=1 // pred_check_branch
      %399 = sbr.rel (0) target = $region247
    $region246: #{tpu_custom_call.1} parent=1 // pred_region
      %400 = vsyncadd %s354, 16
    $region247: #{tpu_custom_call.1} parent=1 // pred_fallthru
      _
    %s401 = scalar_lea.vmem %s2, %s51
    %s402 = scalar_lea.vmem [#allocation2], 7
    %s403 = scalar_lea.sflag [#allocation3], 7
    %p405 = scmp.lt.u32.totalorder 1, 8
    %p406 = pneg %p405
    // Predicated region
    $region248: #{tpu_custom_call.1} parent=1 // pred_check
      _
    $region249: #{tpu_custom_call.1} parent=1 // pred_check_branch
      %408 = sbr.rel (%p405) target = $region251
    $region250: #{tpu_custom_call.1} parent=1 // pred_region
      %s424 = sand.u32 1, 7
      %p425 = scmp.eq.s32.totalorder %s424, 0
      %p426 = pneg %p425
      // Predicated region
      $region263: #{tpu_custom_call.1} parent=250 // pred_check
        _
      $region264: #{tpu_custom_call.1} parent=250 // pred_check_branch
        %428 = sbr.rel (%p425) target = $region266
      $region265: #{tpu_custom_call.1} parent=250 // pred_region
        %s429 = sand.u32 1, 7
        %s430 = ssub.s32 1, %s429
        %s431 = scalar_lea.vmem %s401, %s430
        %s432 = ssub.s32 1, %s429
        %s433 = scalar_lea.vmem %s402, %s432 [#allocation2]
        %s434 = sshll.u32 1, %s429
        %s435 = ssub.s32 %s434, 1
        loop: start=0, step=1, limit=1
        $region267: #{tpu_custom_call.1} parent=265 // loop_pre_header
          _
        $region268: #{tpu_custom_call.1} parent=265 // loop_header
          %s437 = sphi 0, %s441
          %p438 = scmp.ge.s32.totalorder %s437, 1
          %s442 = sphi %s431, %s431
          %s443 = sphi %s433, %s433
        $region269: #{tpu_custom_call.1} parent=265 // loop_header_branch
          %440 = sbr.rel (%p438) target = $region273
        $region270: #{tpu_custom_call.1} parent=265 // loop_body
          %v444 = vld [vmem:[%s442] sm:%s435]
          %445 = vst [vmem:[%s443] sm:%s435] %v444
        $region271: #{tpu_custom_call.1} parent=265 // loop_footer
          %s441 = sadd.s32 1, %s437
        $region272: #{tpu_custom_call.1} parent=265 // loop_footer_branch
          %436 = sbr.rel target = $region268
        $region273: #{tpu_custom_call.1} parent=265 // loop_exit
          _
      $region266: #{tpu_custom_call.1} parent=250 // pred_fallthru
        _
    $region251: #{tpu_custom_call.1} parent=1 // pred_fallthru
      _
    // Predicated region
    $region252: #{tpu_custom_call.1} parent=1 // pred_check
      %p409 = pneg %p405
    $region253: #{tpu_custom_call.1} parent=1 // pred_check_branch
      %411 = sbr.rel (%p409) target = $region255
    $region254: #{tpu_custom_call.1} parent=1 // pred_region
      %s412 = sshll.u32 1, 1
      %s413 = ssub.s32 %s412, 1
      loop: start=0, step=1, limit=1
      $region256: #{tpu_custom_call.1} parent=254 // loop_pre_header
        _
      $region257: #{tpu_custom_call.1} parent=254 // loop_header
        %s415 = sphi 0, %s419
        %p416 = scmp.ge.s32.totalorder %s415, 1
        %s420 = sphi %s401, %s401
        %s421 = sphi %s402, %s402
      $region258: #{tpu_custom_call.1} parent=254 // loop_header_branch
        %418 = sbr.rel (%p416) target = $region262
      $region259: #{tpu_custom_call.1} parent=254 // loop_body
        %v422 = vld [vmem:[%s420] sm:%s413]
        %423 = vst [vmem:[%s421] sm:%s413] %v422
      $region260: #{tpu_custom_call.1} parent=254 // loop_footer
        %s419 = sadd.s32 1, %s415
      $region261: #{tpu_custom_call.1} parent=254 // loop_footer_branch
        %414 = sbr.rel target = $region257
      $region262: #{tpu_custom_call.1} parent=254 // loop_exit
        _
    $region255: #{tpu_custom_call.1} parent=1 // pred_fallthru
      _
    // Predicated region
    $region274: #{tpu_custom_call.1} parent=1 // pred_check
      _
    $region275: #{tpu_custom_call.1} parent=1 // pred_check_branch
      %448 = sbr.rel (0) target = $region277
    $region276: #{tpu_custom_call.1} parent=1 // pred_region
      %449 = vsyncadd %s403, 16
    $region277: #{tpu_custom_call.1} parent=1 // pred_fallthru
      _
    %s450 = scalar_lea.vmem %s2, %s52
    %s451 = scalar_lea.vmem [#allocation2], 8
    %s452 = scalar_lea.sflag [#allocation3], 8
    %p454 = scmp.lt.u32.totalorder 1, 8
    %p455 = pneg %p454
    // Predicated region
    $region278: #{tpu_custom_call.1} parent=1 // pred_check
      _
    $region279: #{tpu_custom_call.1} parent=1 // pred_check_branch
      %457 = sbr.rel (%p454) target = $region281
    $region280: #{tpu_custom_call.1} parent=1 // pred_region
      %s473 = sand.u32 1, 7
      %p474 = scmp.eq.s32.totalorder %s473, 0
      %p475 = pneg %p474
      // Predicated region
      $region293: #{tpu_custom_call.1} parent=280 // pred_check
        _
      $region294: #{tpu_custom_call.1} parent=280 // pred_check_branch
        %477 = sbr.rel (%p474) target = $region296
      $region295: #{tpu_custom_call.1} parent=280 // pred_region
        %s478 = sand.u32 1, 7
        %s479 = ssub.s32 1, %s478
        %s480 = scalar_lea.vmem %s450, %s479
        %s481 = ssub.s32 1, %s478
        %s482 = scalar_lea.vmem %s451, %s481 [#allocation2]
        %s483 = sshll.u32 1, %s478
        %s484 = ssub.s32 %s483, 1
        loop: start=0, step=1, limit=1
        $region297: #{tpu_custom_call.1} parent=295 // loop_pre_header
          _
        $region298: #{tpu_custom_call.1} parent=295 // loop_header
          %s486 = sphi 0, %s490
          %p487 = scmp.ge.s32.totalorder %s486, 1
          %s491 = sphi %s480, %s480
          %s492 = sphi %s482, %s482
        $region299: #{tpu_custom_call.1} parent=295 // loop_header_branch
          %489 = sbr.rel (%p487) target = $region303
        $region300: #{tpu_custom_call.1} parent=295 // loop_body
          %v493 = vld [vmem:[%s491] sm:%s484]
          %494 = vst [vmem:[%s492] sm:%s484] %v493
        $region301: #{tpu_custom_call.1} parent=295 // loop_footer
          %s490 = sadd.s32 1, %s486
        $region302: #{tpu_custom_call.1} parent=295 // loop_footer_branch
          %485 = sbr.rel target = $region298
        $region303: #{tpu_custom_call.1} parent=295 // loop_exit
          _
      $region296: #{tpu_custom_call.1} parent=280 // pred_fallthru
        _
    $region281: #{tpu_custom_call.1} parent=1 // pred_fallthru
      _
    // Predicated region
    $region282: #{tpu_custom_call.1} parent=1 // pred_check
      %p458 = pneg %p454
    $region283: #{tpu_custom_call.1} parent=1 // pred_check_branch
      %460 = sbr.rel (%p458) target = $region285
    $region284: #{tpu_custom_call.1} parent=1 // pred_region
      %s461 = sshll.u32 1, 1
      %s462 = ssub.s32 %s461, 1
      loop: start=0, step=1, limit=1
      $region286: #{tpu_custom_call.1} parent=284 // loop_pre_header
        _
      $region287: #{tpu_custom_call.1} parent=284 // loop_header
        %s464 = sphi 0, %s468
        %p465 = scmp.ge.s32.totalorder %s464, 1
        %s469 = sphi %s450, %s450
        %s470 = sphi %s451, %s451
      $region288: #{tpu_custom_call.1} parent=284 // loop_header_branch
        %467 = sbr.rel (%p465) target = $region292
      $region289: #{tpu_custom_call.1} parent=284 // loop_body
        %v471 = vld [vmem:[%s469] sm:%s462]
        %472 = vst [vmem:[%s470] sm:%s462] %v471
      $region290: #{tpu_custom_call.1} parent=284 // loop_footer
        %s468 = sadd.s32 1, %s464
      $region291: #{tpu_custom_call.1} parent=284 // loop_footer_branch
        %463 = sbr.rel target = $region287
      $region292: #{tpu_custom_call.1} parent=284 // loop_exit
        _
    $region285: #{tpu_custom_call.1} parent=1 // pred_fallthru
      _
    // Predicated region
    $region304: #{tpu_custom_call.1} parent=1 // pred_check
      _
    $region305: #{tpu_custom_call.1} parent=1 // pred_check_branch
      %497 = sbr.rel (0) target = $region307
    $region306: #{tpu_custom_call.1} parent=1 // pred_region
      %498 = vsyncadd %s452, 16
    $region307: #{tpu_custom_call.1} parent=1 // pred_fallthru
      _
    %s499 = scalar_lea.vmem %s2, %s53
    %s500 = scalar_lea.vmem [#allocation2], 9
    %s501 = scalar_lea.sflag [#allocation3], 9
    %p503 = scmp.lt.u32.totalorder 1, 8
    %p504 = pneg %p503
    // Predicated region
    $region308: #{tpu_custom_call.1} parent=1 // pred_check
      _
    $region309: #{tpu_custom_call.1} parent=1 // pred_check_branch
      %506 = sbr.rel (%p503) target = $region311
    $region310: #{tpu_custom_call.1} parent=1 // pred_region
      %s522 = sand.u32 1, 7
      %p523 = scmp.eq.s32.totalorder %s522, 0
      %p524 = pneg %p523
      // Predicated region
      $region323: #{tpu_custom_call.1} parent=310 // pred_check
        _
      $region324: #{tpu_custom_call.1} parent=310 // pred_check_branch
        %526 = sbr.rel (%p523) target = $region326
      $region325: #{tpu_custom_call.1} parent=310 // pred_region
        %s527 = sand.u32 1, 7
        %s528 = ssub.s32 1, %s527
        %s529 = scalar_lea.vmem %s499, %s528
        %s530 = ssub.s32 1, %s527
        %s531 = scalar_lea.vmem %s500, %s530 [#allocation2]
        %s532 = sshll.u32 1, %s527
        %s533 = ssub.s32 %s532, 1
        loop: start=0, step=1, limit=1
        $region327: #{tpu_custom_call.1} parent=325 // loop_pre_header
          _
        $region328: #{tpu_custom_call.1} parent=325 // loop_header
          %s535 = sphi 0, %s539
          %p536 = scmp.ge.s32.totalorder %s535, 1
          %s540 = sphi %s529, %s529
          %s541 = sphi %s531, %s531
        $region329: #{tpu_custom_call.1} parent=325 // loop_header_branch
          %538 = sbr.rel (%p536) target = $region333
        $region330: #{tpu_custom_call.1} parent=325 // loop_body
          %v542 = vld [vmem:[%s540] sm:%s533]
          %543 = vst [vmem:[%s541] sm:%s533] %v542
        $region331: #{tpu_custom_call.1} parent=325 // loop_footer
          %s539 = sadd.s32 1, %s535
        $region332: #{tpu_custom_call.1} parent=325 // loop_footer_branch
          %534 = sbr.rel target = $region328
        $region333: #{tpu_custom_call.1} parent=325 // loop_exit
          _
      $region326: #{tpu_custom_call.1} parent=310 // pred_fallthru
        _
    $region311: #{tpu_custom_call.1} parent=1 // pred_fallthru
      _
    // Predicated region
    $region312: #{tpu_custom_call.1} parent=1 // pred_check
      %p507 = pneg %p503
    $region313: #{tpu_custom_call.1} parent=1 // pred_check_branch
      %509 = sbr.rel (%p507) target = $region315
    $region314: #{tpu_custom_call.1} parent=1 // pred_region
      %s510 = sshll.u32 1, 1
      %s511 = ssub.s32 %s510, 1
      loop: start=0, step=1, limit=1
      $region316: #{tpu_custom_call.1} parent=314 // loop_pre_header
        _
      $region317: #{tpu_custom_call.1} parent=314 // loop_header
        %s513 = sphi 0, %s517
        %p514 = scmp.ge.s32.totalorder %s513, 1
        %s518 = sphi %s499, %s499
        %s519 = sphi %s500, %s500
      $region318: #{tpu_custom_call.1} parent=314 // loop_header_branch
        %516 = sbr.rel (%p514) target = $region322
      $region319: #{tpu_custom_call.1} parent=314 // loop_body
        %v520 = vld [vmem:[%s518] sm:%s511]
        %521 = vst [vmem:[%s519] sm:%s511] %v520
      $region320: #{tpu_custom_call.1} parent=314 // loop_footer
        %s517 = sadd.s32 1, %s513
      $region321: #{tpu_custom_call.1} parent=314 // loop_footer_branch
        %512 = sbr.rel target = $region317
      $region322: #{tpu_custom_call.1} parent=314 // loop_exit
        _
    $region315: #{tpu_custom_call.1} parent=1 // pred_fallthru
      _
    // Predicated region
    $region334: #{tpu_custom_call.1} parent=1 // pred_check
      _
    $region335: #{tpu_custom_call.1} parent=1 // pred_check_branch
      %546 = sbr.rel (0) target = $region337
    $region336: #{tpu_custom_call.1} parent=1 // pred_region
      %547 = vsyncadd %s501, 16
    $region337: #{tpu_custom_call.1} parent=1 // pred_fallthru
      _
    %s548 = scalar_lea.vmem %s2, %s54
    %s549 = scalar_lea.vmem [#allocation2], 10
    %s550 = scalar_lea.sflag [#allocation3], 10
    %p552 = scmp.lt.u32.totalorder 1, 8
    %p553 = pneg %p552
    // Predicated region
    $region338: #{tpu_custom_call.1} parent=1 // pred_check
      _
    $region339: #{tpu_custom_call.1} parent=1 // pred_check_branch
      %555 = sbr.rel (%p552) target = $region341
    $region340: #{tpu_custom_call.1} parent=1 // pred_region
      %s571 = sand.u32 1, 7
      %p572 = scmp.eq.s32.totalorder %s571, 0
      %p573 = pneg %p572
      // Predicated region
      $region353: #{tpu_custom_call.1} parent=340 // pred_check
        _
      $region354: #{tpu_custom_call.1} parent=340 // pred_check_branch
        %575 = sbr.rel (%p572) target = $region356
      $region355: #{tpu_custom_call.1} parent=340 // pred_region
        %s576 = sand.u32 1, 7
        %s577 = ssub.s32 1, %s576
        %s578 = scalar_lea.vmem %s548, %s577
        %s579 = ssub.s32 1, %s576
        %s580 = scalar_lea.vmem %s549, %s579 [#allocation2]
        %s581 = sshll.u32 1, %s576
        %s582 = ssub.s32 %s581, 1
        loop: start=0, step=1, limit=1
        $region357: #{tpu_custom_call.1} parent=355 // loop_pre_header
          _
        $region358: #{tpu_custom_call.1} parent=355 // loop_header
          %s584 = sphi 0, %s588
          %p585 = scmp.ge.s32.totalorder %s584, 1
          %s589 = sphi %s578, %s578
          %s590 = sphi %s580, %s580
        $region359: #{tpu_custom_call.1} parent=355 // loop_header_branch
          %587 = sbr.rel (%p585) target = $region363
        $region360: #{tpu_custom_call.1} parent=355 // loop_body
          %v591 = vld [vmem:[%s589] sm:%s582]
          %592 = vst [vmem:[%s590] sm:%s582] %v591
        $region361: #{tpu_custom_call.1} parent=355 // loop_footer
          %s588 = sadd.s32 1, %s584
        $region362: #{tpu_custom_call.1} parent=355 // loop_footer_branch
          %583 = sbr.rel target = $region358
        $region363: #{tpu_custom_call.1} parent=355 // loop_exit
          _
      $region356: #{tpu_custom_call.1} parent=340 // pred_fallthru
        _
    $region341: #{tpu_custom_call.1} parent=1 // pred_fallthru
      _
    // Predicated region
    $region342: #{tpu_custom_call.1} parent=1 // pred_check
      %p556 = pneg %p552
    $region343: #{tpu_custom_call.1} parent=1 // pred_check_branch
      %558 = sbr.rel (%p556) target = $region345
    $region344: #{tpu_custom_call.1} parent=1 // pred_region
      %s559 = sshll.u32 1, 1
      %s560 = ssub.s32 %s559, 1
      loop: start=0, step=1, limit=1
      $region346: #{tpu_custom_call.1} parent=344 // loop_pre_header
        _
      $region347: #{tpu_custom_call.1} parent=344 // loop_header
        %s562 = sphi 0, %s566
        %p563 = scmp.ge.s32.totalorder %s562, 1
        %s567 = sphi %s548, %s548
        %s568 = sphi %s549, %s549
      $region348: #{tpu_custom_call.1} parent=344 // loop_header_branch
        %565 = sbr.rel (%p563) target = $region352
      $region349: #{tpu_custom_call.1} parent=344 // loop_body
        %v569 = vld [vmem:[%s567] sm:%s560]
        %570 = vst [vmem:[%s568] sm:%s560] %v569
      $region350: #{tpu_custom_call.1} parent=344 // loop_footer
        %s566 = sadd.s32 1, %s562
      $region351: #{tpu_custom_call.1} parent=344 // loop_footer_branch
        %561 = sbr.rel target = $region347
      $region352: #{tpu_custom_call.1} parent=344 // loop_exit
        _
    $region345: #{tpu_custom_call.1} parent=1 // pred_fallthru
      _
    // Predicated region
    $region364: #{tpu_custom_call.1} parent=1 // pred_check
      _
    $region365: #{tpu_custom_call.1} parent=1 // pred_check_branch
      %595 = sbr.rel (0) target = $region367
    $region366: #{tpu_custom_call.1} parent=1 // pred_region
      %596 = vsyncadd %s550, 16
    $region367: #{tpu_custom_call.1} parent=1 // pred_fallthru
      _
    %s597 = scalar_lea.vmem %s2, %s55
    %s598 = scalar_lea.vmem [#allocation2], 11
    %s599 = scalar_lea.sflag [#allocation3], 11
    %p601 = scmp.lt.u32.totalorder 1, 8
    %p602 = pneg %p601
    // Predicated region
    $region368: #{tpu_custom_call.1} parent=1 // pred_check
      _
    $region369: #{tpu_custom_call.1} parent=1 // pred_check_branch
      %604 = sbr.rel (%p601) target = $region371
    $region370: #{tpu_custom_call.1} parent=1 // pred_region
      %s620 = sand.u32 1, 7
      %p621 = scmp.eq.s32.totalorder %s620, 0
      %p622 = pneg %p621
      // Predicated region
      $region383: #{tpu_custom_call.1} parent=370 // pred_check
        _
      $region384: #{tpu_custom_call.1} parent=370 // pred_check_branch
        %624 = sbr.rel (%p621) target = $region386
      $region385: #{tpu_custom_call.1} parent=370 // pred_region
        %s625 = sand.u32 1, 7
        %s626 = ssub.s32 1, %s625
        %s627 = scalar_lea.vmem %s597, %s626
        %s628 = ssub.s32 1, %s625
        %s629 = scalar_lea.vmem %s598, %s628 [#allocation2]
        %s630 = sshll.u32 1, %s625
        %s631 = ssub.s32 %s630, 1
        loop: start=0, step=1, limit=1
        $region387: #{tpu_custom_call.1} parent=385 // loop_pre_header
          _
        $region388: #{tpu_custom_call.1} parent=385 // loop_header
          %s633 = sphi 0, %s637
          %p634 = scmp.ge.s32.totalorder %s633, 1
          %s638 = sphi %s627, %s627
          %s639 = sphi %s629, %s629
        $region389: #{tpu_custom_call.1} parent=385 // loop_header_branch
          %636 = sbr.rel (%p634) target = $region393
        $region390: #{tpu_custom_call.1} parent=385 // loop_body
          %v640 = vld [vmem:[%s638] sm:%s631]
          %641 = vst [vmem:[%s639] sm:%s631] %v640
        $region391: #{tpu_custom_call.1} parent=385 // loop_footer
          %s637 = sadd.s32 1, %s633
        $region392: #{tpu_custom_call.1} parent=385 // loop_footer_branch
          %632 = sbr.rel target = $region388
        $region393: #{tpu_custom_call.1} parent=385 // loop_exit
          _
      $region386: #{tpu_custom_call.1} parent=370 // pred_fallthru
        _
    $region371: #{tpu_custom_call.1} parent=1 // pred_fallthru
      _
    // Predicated region
    $region372: #{tpu_custom_call.1} parent=1 // pred_check
      %p605 = pneg %p601
    $region373: #{tpu_custom_call.1} parent=1 // pred_check_branch
      %607 = sbr.rel (%p605) target = $region375
    $region374: #{tpu_custom_call.1} parent=1 // pred_region
      %s608 = sshll.u32 1, 1
      %s609 = ssub.s32 %s608, 1
      loop: start=0, step=1, limit=1
      $region376: #{tpu_custom_call.1} parent=374 // loop_pre_header
        _
      $region377: #{tpu_custom_call.1} parent=374 // loop_header
        %s611 = sphi 0, %s615
        %p612 = scmp.ge.s32.totalorder %s611, 1
        %s616 = sphi %s597, %s597
        %s617 = sphi %s598, %s598
      $region378: #{tpu_custom_call.1} parent=374 // loop_header_branch
        %614 = sbr.rel (%p612) target = $region382
      $region379: #{tpu_custom_call.1} parent=374 // loop_body
        %v618 = vld [vmem:[%s616] sm:%s609]
        %619 = vst [vmem:[%s617] sm:%s609] %v618
      $region380: #{tpu_custom_call.1} parent=374 // loop_footer
        %s615 = sadd.s32 1, %s611
      $region381: #{tpu_custom_call.1} parent=374 // loop_footer_branch
        %610 = sbr.rel target = $region377
      $region382: #{tpu_custom_call.1} parent=374 // loop_exit
        _
    $region375: #{tpu_custom_call.1} parent=1 // pred_fallthru
      _
    // Predicated region
    $region394: #{tpu_custom_call.1} parent=1 // pred_check
      _
    $region395: #{tpu_custom_call.1} parent=1 // pred_check_branch
      %644 = sbr.rel (0) target = $region397
    $region396: #{tpu_custom_call.1} parent=1 // pred_region
      %645 = vsyncadd %s599, 16
    $region397: #{tpu_custom_call.1} parent=1 // pred_fallthru
      _
    %s646 = scalar_lea.vmem %s2, %s56
    %s647 = scalar_lea.vmem [#allocation2], 12
    %s648 = scalar_lea.sflag [#allocation3], 12
    %p650 = scmp.lt.u32.totalorder 1, 8
    %p651 = pneg %p650
    // Predicated region
    $region398: #{tpu_custom_call.1} parent=1 // pred_check
      _
    $region399: #{tpu_custom_call.1} parent=1 // pred_check_branch
      %653 = sbr.rel (%p650) target = $region401
    $region400: #{tpu_custom_call.1} parent=1 // pred_region
      %s669 = sand.u32 1, 7
      %p670 = scmp.eq.s32.totalorder %s669, 0
      %p671 = pneg %p670
      // Predicated region
      $region413: #{tpu_custom_call.1} parent=400 // pred_check
        _
      $region414: #{tpu_custom_call.1} parent=400 // pred_check_branch
        %673 = sbr.rel (%p670) target = $region416
      $region415: #{tpu_custom_call.1} parent=400 // pred_region
        %s674 = sand.u32 1, 7
        %s675 = ssub.s32 1, %s674
        %s676 = scalar_lea.vmem %s646, %s675
        %s677 = ssub.s32 1, %s674
        %s678 = scalar_lea.vmem %s647, %s677 [#allocation2]
        %s679 = sshll.u32 1, %s674
        %s680 = ssub.s32 %s679, 1
        loop: start=0, step=1, limit=1
        $region417: #{tpu_custom_call.1} parent=415 // loop_pre_header
          _
        $region418: #{tpu_custom_call.1} parent=415 // loop_header
          %s682 = sphi 0, %s686
          %p683 = scmp.ge.s32.totalorder %s682, 1
          %s687 = sphi %s676, %s676
          %s688 = sphi %s678, %s678
        $region419: #{tpu_custom_call.1} parent=415 // loop_header_branch
          %685 = sbr.rel (%p683) target = $region423
        $region420: #{tpu_custom_call.1} parent=415 // loop_body
          %v689 = vld [vmem:[%s687] sm:%s680]
          %690 = vst [vmem:[%s688] sm:%s680] %v689
        $region421: #{tpu_custom_call.1} parent=415 // loop_footer
          %s686 = sadd.s32 1, %s682
        $region422: #{tpu_custom_call.1} parent=415 // loop_footer_branch
          %681 = sbr.rel target = $region418
        $region423: #{tpu_custom_call.1} parent=415 // loop_exit
          _
      $region416: #{tpu_custom_call.1} parent=400 // pred_fallthru
        _
    $region401: #{tpu_custom_call.1} parent=1 // pred_fallthru
      _
    // Predicated region
    $region402: #{tpu_custom_call.1} parent=1 // pred_check
      %p654 = pneg %p650
    $region403: #{tpu_custom_call.1} parent=1 // pred_check_branch
      %656 = sbr.rel (%p654) target = $region405
    $region404: #{tpu_custom_call.1} parent=1 // pred_region
      %s657 = sshll.u32 1, 1
      %s658 = ssub.s32 %s657, 1
      loop: start=0, step=1, limit=1
      $region406: #{tpu_custom_call.1} parent=404 // loop_pre_header
        _
      $region407: #{tpu_custom_call.1} parent=404 // loop_header
        %s660 = sphi 0, %s664
        %p661 = scmp.ge.s32.totalorder %s660, 1
        %s665 = sphi %s646, %s646
        %s666 = sphi %s647, %s647
      $region408: #{tpu_custom_call.1} parent=404 // loop_header_branch
        %663 = sbr.rel (%p661) target = $region412
      $region409: #{tpu_custom_call.1} parent=404 // loop_body
        %v667 = vld [vmem:[%s665] sm:%s658]
        %668 = vst [vmem:[%s666] sm:%s658] %v667
      $region410: #{tpu_custom_call.1} parent=404 // loop_footer
        %s664 = sadd.s32 1, %s660
      $region411: #{tpu_custom_call.1} parent=404 // loop_footer_branch
        %659 = sbr.rel target = $region407
      $region412: #{tpu_custom_call.1} parent=404 // loop_exit
        _
    $region405: #{tpu_custom_call.1} parent=1 // pred_fallthru
      _
    // Predicated region
    $region424: #{tpu_custom_call.1} parent=1 // pred_check
      _
    $region425: #{tpu_custom_call.1} parent=1 // pred_check_branch
      %693 = sbr.rel (0) target = $region427
    $region426: #{tpu_custom_call.1} parent=1 // pred_region
      %694 = vsyncadd %s648, 16
    $region427: #{tpu_custom_call.1} parent=1 // pred_fallthru
      _
    %s695 = scalar_lea.vmem %s2, %s57
    %s696 = scalar_lea.vmem [#allocation2], 13
    %s697 = scalar_lea.sflag [#allocation3], 13
    %p699 = scmp.lt.u32.totalorder 1, 8
    %p700 = pneg %p699
    // Predicated region
    $region428: #{tpu_custom_call.1} parent=1 // pred_check
      _
    $region429: #{tpu_custom_call.1} parent=1 // pred_check_branch
      %702 = sbr.rel (%p699) target = $region431
    $region430: #{tpu_custom_call.1} parent=1 // pred_region
      %s718 = sand.u32 1, 7
      %p719 = scmp.eq.s32.totalorder %s718, 0
      %p720 = pneg %p719
      // Predicated region
      $region443: #{tpu_custom_call.1} parent=430 // pred_check
        _
      $region444: #{tpu_custom_call.1} parent=430 // pred_check_branch
        %722 = sbr.rel (%p719) target = $region446
      $region445: #{tpu_custom_call.1} parent=430 // pred_region
        %s723 = sand.u32 1, 7
        %s724 = ssub.s32 1, %s723
        %s725 = scalar_lea.vmem %s695, %s724
        %s726 = ssub.s32 1, %s723
        %s727 = scalar_lea.vmem %s696, %s726 [#allocation2]
        %s728 = sshll.u32 1, %s723
        %s729 = ssub.s32 %s728, 1
        loop: start=0, step=1, limit=1
        $region447: #{tpu_custom_call.1} parent=445 // loop_pre_header
          _
        $region448: #{tpu_custom_call.1} parent=445 // loop_header
          %s731 = sphi 0, %s735
          %p732 = scmp.ge.s32.totalorder %s731, 1
          %s736 = sphi %s725, %s725
          %s737 = sphi %s727, %s727
        $region449: #{tpu_custom_call.1} parent=445 // loop_header_branch
          %734 = sbr.rel (%p732) target = $region453
        $region450: #{tpu_custom_call.1} parent=445 // loop_body
          %v738 = vld [vmem:[%s736] sm:%s729]
          %739 = vst [vmem:[%s737] sm:%s729] %v738
        $region451: #{tpu_custom_call.1} parent=445 // loop_footer
          %s735 = sadd.s32 1, %s731
        $region452: #{tpu_custom_call.1} parent=445 // loop_footer_branch
          %730 = sbr.rel target = $region448
        $region453: #{tpu_custom_call.1} parent=445 // loop_exit
          _
      $region446: #{tpu_custom_call.1} parent=430 // pred_fallthru
        _
    $region431: #{tpu_custom_call.1} parent=1 // pred_fallthru
      _
    // Predicated region
    $region432: #{tpu_custom_call.1} parent=1 // pred_check
      %p703 = pneg %p699
    $region433: #{tpu_custom_call.1} parent=1 // pred_check_branch
      %705 = sbr.rel (%p703) target = $region435
    $region434: #{tpu_custom_call.1} parent=1 // pred_region
      %s706 = sshll.u32 1, 1
      %s707 = ssub.s32 %s706, 1
      loop: start=0, step=1, limit=1
      $region436: #{tpu_custom_call.1} parent=434 // loop_pre_header
        _
      $region437: #{tpu_custom_call.1} parent=434 // loop_header
        %s709 = sphi 0, %s713
        %p710 = scmp.ge.s32.totalorder %s709, 1
        %s714 = sphi %s695, %s695
        %s715 = sphi %s696, %s696
      $region438: #{tpu_custom_call.1} parent=434 // loop_header_branch
        %712 = sbr.rel (%p710) target = $region442
      $region439: #{tpu_custom_call.1} parent=434 // loop_body
        %v716 = vld [vmem:[%s714] sm:%s707]
        %717 = vst [vmem:[%s715] sm:%s707] %v716
      $region440: #{tpu_custom_call.1} parent=434 // loop_footer
        %s713 = sadd.s32 1, %s709
      $region441: #{tpu_custom_call.1} parent=434 // loop_footer_branch
        %708 = sbr.rel target = $region437
      $region442: #{tpu_custom_call.1} parent=434 // loop_exit
        _
    $region435: #{tpu_custom_call.1} parent=1 // pred_fallthru
      _
    // Predicated region
    $region454: #{tpu_custom_call.1} parent=1 // pred_check
      _
    $region455: #{tpu_custom_call.1} parent=1 // pred_check_branch
      %742 = sbr.rel (0) target = $region457
    $region456: #{tpu_custom_call.1} parent=1 // pred_region
      %743 = vsyncadd %s697, 16
    $region457: #{tpu_custom_call.1} parent=1 // pred_fallthru
      _
    %s744 = scalar_lea.vmem %s2, %s58
    %s745 = scalar_lea.vmem [#allocation2], 14
    %s746 = scalar_lea.sflag [#allocation3], 14
    %p748 = scmp.lt.u32.totalorder 1, 8
    %p749 = pneg %p748
    // Predicated region
    $region458: #{tpu_custom_call.1} parent=1 // pred_check
      _
    $region459: #{tpu_custom_call.1} parent=1 // pred_check_branch
      %751 = sbr.rel (%p748) target = $region461
    $region460: #{tpu_custom_call.1} parent=1 // pred_region
      %s767 = sand.u32 1, 7
      %p768 = scmp.eq.s32.totalorder %s767, 0
      %p769 = pneg %p768
      // Predicated region
      $region473: #{tpu_custom_call.1} parent=460 // pred_check
        _
      $region474: #{tpu_custom_call.1} parent=460 // pred_check_branch
        %771 = sbr.rel (%p768) target = $region476
      $region475: #{tpu_custom_call.1} parent=460 // pred_region
        %s772 = sand.u32 1, 7
        %s773 = ssub.s32 1, %s772
        %s774 = scalar_lea.vmem %s744, %s773
        %s775 = ssub.s32 1, %s772
        %s776 = scalar_lea.vmem %s745, %s775 [#allocation2]
        %s777 = sshll.u32 1, %s772
        %s778 = ssub.s32 %s777, 1
        loop: start=0, step=1, limit=1
        $region477: #{tpu_custom_call.1} parent=475 // loop_pre_header
          _
        $region478: #{tpu_custom_call.1} parent=475 // loop_header
          %s780 = sphi 0, %s784
          %p781 = scmp.ge.s32.totalorder %s780, 1
          %s785 = sphi %s774, %s774
          %s786 = sphi %s776, %s776
        $region479: #{tpu_custom_call.1} parent=475 // loop_header_branch
          %783 = sbr.rel (%p781) target = $region483
        $region480: #{tpu_custom_call.1} parent=475 // loop_body
          %v787 = vld [vmem:[%s785] sm:%s778]
          %788 = vst [vmem:[%s786] sm:%s778] %v787
        $region481: #{tpu_custom_call.1} parent=475 // loop_footer
          %s784 = sadd.s32 1, %s780
        $region482: #{tpu_custom_call.1} parent=475 // loop_footer_branch
          %779 = sbr.rel target = $region478
        $region483: #{tpu_custom_call.1} parent=475 // loop_exit
          _
      $region476: #{tpu_custom_call.1} parent=460 // pred_fallthru
        _
    $region461: #{tpu_custom_call.1} parent=1 // pred_fallthru
      _
    // Predicated region
    $region462: #{tpu_custom_call.1} parent=1 // pred_check
      %p752 = pneg %p748
    $region463: #{tpu_custom_call.1} parent=1 // pred_check_branch
      %754 = sbr.rel (%p752) target = $region465
    $region464: #{tpu_custom_call.1} parent=1 // pred_region
      %s755 = sshll.u32 1, 1
      %s756 = ssub.s32 %s755, 1
      loop: start=0, step=1, limit=1
      $region466: #{tpu_custom_call.1} parent=464 // loop_pre_header
        _
      $region467: #{tpu_custom_call.1} parent=464 // loop_header
        %s758 = sphi 0, %s762
        %p759 = scmp.ge.s32.totalorder %s758, 1
        %s763 = sphi %s744, %s744
        %s764 = sphi %s745, %s745
      $region468: #{tpu_custom_call.1} parent=464 // loop_header_branch
        %761 = sbr.rel (%p759) target = $region472
      $region469: #{tpu_custom_call.1} parent=464 // loop_body
        %v765 = vld [vmem:[%s763] sm:%s756]
        %766 = vst [vmem:[%s764] sm:%s756] %v765
      $region470: #{tpu_custom_call.1} parent=464 // loop_footer
        %s762 = sadd.s32 1, %s758
      $region471: #{tpu_custom_call.1} parent=464 // loop_footer_branch
        %757 = sbr.rel target = $region467
      $region472: #{tpu_custom_call.1} parent=464 // loop_exit
        _
    $region465: #{tpu_custom_call.1} parent=1 // pred_fallthru
      _
    // Predicated region
    $region484: #{tpu_custom_call.1} parent=1 // pred_check
      _
    $region485: #{tpu_custom_call.1} parent=1 // pred_check_branch
      %791 = sbr.rel (0) target = $region487
    $region486: #{tpu_custom_call.1} parent=1 // pred_region
      %792 = vsyncadd %s746, 16
    $region487: #{tpu_custom_call.1} parent=1 // pred_fallthru
      _
    %s793 = scalar_lea.vmem %s2, %s59
    %s794 = scalar_lea.vmem [#allocation2], 15
    %s795 = scalar_lea.sflag [#allocation3], 15
    %p797 = scmp.lt.u32.totalorder 1, 8
    %p798 = pneg %p797
    // Predicated region
    $region488: #{tpu_custom_call.1} parent=1 // pred_check
      _
    $region489: #{tpu_custom_call.1} parent=1 // pred_check_branch
      %800 = sbr.rel (%p797) target = $region491
    $region490: #{tpu_custom_call.1} parent=1 // pred_region
      %s816 = sand.u32 1, 7
      %p817 = scmp.eq.s32.totalorder %s816, 0
      %p818 = pneg %p817
      // Predicated region
      $region503: #{tpu_custom_call.1} parent=490 // pred_check
        _
      $region504: #{tpu_custom_call.1} parent=490 // pred_check_branch
        %820 = sbr.rel (%p817) target = $region506
      $region505: #{tpu_custom_call.1} parent=490 // pred_region
        %s821 = sand.u32 1, 7
        %s822 = ssub.s32 1, %s821
        %s823 = scalar_lea.vmem %s793, %s822
        %s824 = ssub.s32 1, %s821
        %s825 = scalar_lea.vmem %s794, %s824 [#allocation2]
        %s826 = sshll.u32 1, %s821
        %s827 = ssub.s32 %s826, 1
        loop: start=0, step=1, limit=1
        $region507: #{tpu_custom_call.1} parent=505 // loop_pre_header
          _
        $region508: #{tpu_custom_call.1} parent=505 // loop_header
          %s829 = sphi 0, %s833
          %p830 = scmp.ge.s32.totalorder %s829, 1
          %s834 = sphi %s823, %s823
          %s835 = sphi %s825, %s825
        $region509: #{tpu_custom_call.1} parent=505 // loop_header_branch
          %832 = sbr.rel (%p830) target = $region513
        $region510: #{tpu_custom_call.1} parent=505 // loop_body
          %v836 = vld [vmem:[%s834] sm:%s827]
          %837 = vst [vmem:[%s835] sm:%s827] %v836
        $region511: #{tpu_custom_call.1} parent=505 // loop_footer
          %s833 = sadd.s32 1, %s829
        $region512: #{tpu_custom_call.1} parent=505 // loop_footer_branch
          %828 = sbr.rel target = $region508
        $region513: #{tpu_custom_call.1} parent=505 // loop_exit
          _
      $region506: #{tpu_custom_call.1} parent=490 // pred_fallthru
        _
    $region491: #{tpu_custom_call.1} parent=1 // pred_fallthru
      _
    // Predicated region
    $region492: #{tpu_custom_call.1} parent=1 // pred_check
      %p801 = pneg %p797
    $region493: #{tpu_custom_call.1} parent=1 // pred_check_branch
      %803 = sbr.rel (%p801) target = $region495
    $region494: #{tpu_custom_call.1} parent=1 // pred_region
      %s804 = sshll.u32 1, 1
      %s805 = ssub.s32 %s804, 1
      loop: start=0, step=1, limit=1
      $region496: #{tpu_custom_call.1} parent=494 // loop_pre_header
        _
      $region497: #{tpu_custom_call.1} parent=494 // loop_header
        %s807 = sphi 0, %s811
        %p808 = scmp.ge.s32.totalorder %s807, 1
        %s812 = sphi %s793, %s793
        %s813 = sphi %s794, %s794
      $region498: #{tpu_custom_call.1} parent=494 // loop_header_branch
        %810 = sbr.rel (%p808) target = $region502
      $region499: #{tpu_custom_call.1} parent=494 // loop_body
        %v814 = vld [vmem:[%s812] sm:%s805]
        %815 = vst [vmem:[%s813] sm:%s805] %v814
      $region500: #{tpu_custom_call.1} parent=494 // loop_footer
        %s811 = sadd.s32 1, %s807
      $region501: #{tpu_custom_call.1} parent=494 // loop_footer_branch
        %806 = sbr.rel target = $region497
      $region502: #{tpu_custom_call.1} parent=494 // loop_exit
        _
    $region495: #{tpu_custom_call.1} parent=1 // pred_fallthru
      _
    // Predicated region
    $region514: #{tpu_custom_call.1} parent=1 // pred_check
      _
    $region515: #{tpu_custom_call.1} parent=1 // pred_check_branch
      %840 = sbr.rel (0) target = $region517
    $region516: #{tpu_custom_call.1} parent=1 // pred_region
      %841 = vsyncadd %s795, 16
    $region517: #{tpu_custom_call.1} parent=1 // pred_fallthru
      _
    %s842 = smul.u32 1, 1
    %s843 = sshll.u32 %s842, 4
    %844 = dma.done [#allocation3], %s843
    %s845 = sshll.u32 %s842, 4
    %846 = dma.done %s109, %s845
    %s847 = sshll.u32 %s842, 4
    %848 = dma.done %s158, %s847
    %s849 = sshll.u32 %s842, 4
    %850 = dma.done %s207, %s849
    %s851 = sshll.u32 %s842, 4
    %852 = dma.done %s256, %s851
    %s853 = sshll.u32 %s842, 4
    %854 = dma.done %s305, %s853
    %s855 = sshll.u32 %s842, 4
    %856 = dma.done %s354, %s855
    %s857 = sshll.u32 %s842, 4
    %858 = dma.done %s403, %s857
    %s859 = sshll.u32 %s842, 4
    %860 = dma.done %s452, %s859
    %s861 = sshll.u32 %s842, 4
    %862 = dma.done %s501, %s861
    %s863 = sshll.u32 %s842, 4
    %864 = dma.done %s550, %s863
    %s865 = sshll.u32 %s842, 4
    %866 = dma.done %s599, %s865
    %s867 = sshll.u32 %s842, 4
    %868 = dma.done %s648, %s867
    %s869 = sshll.u32 %s842, 4
    %870 = dma.done %s697, %s869
    %s871 = sshll.u32 %s842, 4
    %872 = dma.done %s746, %s871
    %s873 = sshll.u32 %s842, 4
    %874 = dma.done %s795, %s873
    %v875 = vld [vmem:[#allocation2] sm:$0xff]
    %v876 = vld [vmem:[#allocation2 + $0x8] sm:$0xff]
    %v877 = vld [vmem:[%s3] sm:$0xff]
    %v878 = vld [vmem:[%s3 + $0x8] sm:$0xff]
    %v879 = vld [vmem:[%s3 + $0x10] sm:$0xff]
    %v880 = vld [vmem:[%s3 + $0x18] sm:$0xff]
    %v881 = vld [vmem:[%s3 + $0x20] sm:$0xff]
    %v882 = vld [vmem:[%s3 + $0x28] sm:$0xff]
    %v883 = vld [vmem:[%s3 + $0x30] sm:$0xff]
    %v884 = vld [vmem:[%s3 + $0x38] sm:$0xff]
    %v885 = vld [vmem:[%s3 + $0x40] sm:$0xff]
    %v886 = vld [vmem:[%s3 + $0x48] sm:$0xff]
    %v887 = vld [vmem:[%s3 + $0x50] sm:$0xff]
    %v888 = vld [vmem:[%s3 + $0x58] sm:$0xff]
    %v889 = vld [vmem:[%s3 + $0x60] sm:$0xff]
    %v890 = vld [vmem:[%s3 + $0x68] sm:$0xff]
    %v891 = vld [vmem:[%s3 + $0x70] sm:$0xff]
    %v892 = vld [vmem:[%s3 + $0x78] sm:$0xff]
    %v893 = vld [vmem:[%s4] sm:$0x3]
    %v895 = vlaneseq
    %v896 = vshrl.u32 %v895, 7
    %v897 = vsub.s32 0, %v896
    %v898 = vrot.slane %v893, %v897
    %v899 = vlaneseq
    %v900 = vshrl.u32 %v899, 7
    %v901 = vsub.s32 1, %v900
    %v902 = vrot.slane %v893, %v901
    %vm905 = vcmask 523264
    %v907 = vsel %vm905, %v875, 0
    %v910 = vsel %vm905, %v876, 0
    %912 = vmatprep.subr.mxu0 0.0
    %913 = vmatpush1.msra.mxu0 0.0
    %914 = vmatprep.subr.mxu0 0.0
    %915 = vmatpush1.msra.mxu0 0.0
    %916 = vmatprep.subr.mxu0 0.0
    %917 = vmatpush1.msra.mxu0 0.0
    %918 = vmatprep.subr.mxu0 0.0
    %919 = vmatpush1.msra.mxu0 0.0
    %920 = vmatprep.subr.mxu0 0.0
    %921 = vmatpush1.msra.mxu0 0.0
    %922 = vmatprep.subr.mxu0 0.0
    %923 = vmatpush1.msra.mxu0 0.0
    %924 = vmatprep.subr.mxu0 0.0
    %925 = vmatpush1.msra.mxu0 0.0
    %926 = vmatprep.subr.mxu0 0.0
    %927 = vmatpush1.msra.mxu0 0.0
    %928 = vmatprep.subr.mxu0 %v892
    %929 = vmatpush1.msra.mxu0 %v891
    %930 = vmatprep.subr.mxu0 %v890
    %931 = vmatpush1.msra.mxu0 %v889
    %932 = vmatprep.subr.mxu0 %v888
    %933 = vmatpush1.msra.mxu0 %v887
    %934 = vmatprep.subr.mxu0 %v886
    %935 = vmatpush1.msra.mxu0 %v885
    %936 = vmatprep.subr.mxu0 %v884
    %937 = vmatpush1.msra.mxu0 %v883
    %938 = vmatprep.subr.mxu0 %v882
    %939 = vmatpush1.msra.mxu0 %v881
    %940 = vmatprep.subr.mxu0 %v880
    %941 = vmatpush1.msra.mxu0 %v879
    %942 = vmatprep.subr.mxu0 %v878
    %943 = vmatpush1.msra.mxu0 %v877
    %944 = vmatprep.subr.mxu0 0.0
    %945 = vmatpush2.msra.mxu0 0.0
    %946 = vmatprep.subr.mxu0 0.0
    %947 = vmatpush2.msra.mxu0 0.0
    %948 = vmatprep.subr.mxu0 0.0
    %949 = vmatpush2.msra.mxu0 0.0
    %950 = vmatprep.subr.mxu0 0.0
    %951 = vmatpush2.msra.mxu0 0.0
    %952 = vmatprep.subr.mxu0 0.0
    %953 = vmatpush2.msra.mxu0 0.0
    %954 = vmatprep.subr.mxu0 0.0
    %955 = vmatpush2.msra.mxu0 0.0
    %956 = vmatprep.subr.mxu0 0.0
    %957 = vmatpush2.msra.mxu0 0.0
    %958 = vmatprep.subr.mxu0 0.0
    %959 = vmatpush2.msra.mxu0 0.0
    %960 = vmatprep.subr.mxu0 0.0
    %961 = vmatpush2.msra.mxu0 0.0
    %962 = vmatprep.subr.mxu0 0.0
    %963 = vmatpush2.msra.mxu0 0.0
    %964 = vmatprep.subr.mxu0 0.0
    %965 = vmatpush2.msra.mxu0 0.0
    %966 = vmatprep.subr.mxu0 0.0
    %967 = vmatpush2.msra.mxu0 0.0
    %968 = vmatprep.subr.mxu0 0.0
    %969 = vmatpush2.msra.mxu0 0.0
    %970 = vmatprep.subr.mxu0 0.0
    %971 = vmatpush2.msra.mxu0 0.0
    %972 = vmatprep.subr.mxu0 0.0
    %973 = vmatpush2.msra.mxu0 0.0
    %974 = vmatprep.subr.mxu0 0.0
    %975 = vmatpush2.msra.mxu0 0.0
    %976 = vmatprep.mubr.f32.mxu0 0.0
    %977 = vmatmul.mubr.f32.gmra.mxu0 %v907
    %v978 = vpop.f32.mrf.mxu0
    %v979 = vadd.f32 %v898, %v978
    %v980 = vpop.f32.mrf.mxu0
    %v981 = vadd.f32 %v902, %v980
    %982 = vmatprep.mubr.f32.mxu0 0.0
    %983 = vmatmul.mubr.f32.gmra.mxu0 %v910
    %v984 = vpop.f32.mrf.mxu0
    %v985 = vadd.f32 %v898, %v984
    %v986 = vpop.f32.mrf.mxu0
    %v987 = vadd.f32 %v902, %v986
    %988 = vdwg.mxu0
    %v989 = vxor.u32 %v979, 2147483648
    %v990 = vxor.u32 %v985, 2147483648
    %v991 = vmul.f32 %v989, 1.442695
    %v992 = vpow.pop %v991
    %v993 = vmul.f32 %v990, 1.442695
    %v994 = vpow.pop %v993
    %v995 = vadd.f32 %v992, 1.0
    %v996 = vadd.f32 %v994, 1.0
    %v997 = vrcp.pop %v995
    %v998 = vmul.f32 1.0, %v997
    %v999 = vrcp.pop %v996
    %v1000 = vmul.f32 1.0, %v999
    %v1001 = vtanh.pop %v979
    %v1002 = vtanh.pop %v985
    %v1003 = vxor.u32 %v981, 2147483648
    %v1004 = vxor.u32 %v987, 2147483648
    %v1005 = vmul.f32 %v1003, 1.442695
    %v1006 = vpow.pop %v1005
    %v1007 = vmul.f32 %v1004, 1.442695
    %v1008 = vpow.pop %v1007
    %v1009 = vadd.f32 %v1006, 1.0
    %v1010 = vadd.f32 %v1008, 1.0
    %v1011 = vrcp.pop %v1009
    %v1012 = vmul.f32 1.0, %v1011
    %v1013 = vrcp.pop %v1010
    %v1014 = vmul.f32 1.0, %v1013
    %1017 = vrot.lane.b32.xlu0 %v1001, 64
    %v1018 = vpop.permute.xlu0 %1017
    %1019 = vrot.lane.b32.xlu0 %v1002, 64
    %v1020 = vpop.permute.xlu0 %1019
    %v1023 = vmul.f32 %v998, %v1018
    %v1024 = vmul.f32 %v1000, %v1020
    %v1025 = vtanh.pop %v1023
    %v1026 = vtanh.pop %v1024
    %v1027 = vmul.f32 %v1012, %v1025
    %v1028 = vmul.f32 %v1014, %v1026
    %v1029 = vlaneseq
    %v1030 = vand.u32 %v1029, 127
    %v1031 = vld [vmem:[%s1] sm:$0xff]
    %1032 = vset.pattern.permute.xlu0 0
    %1033 = vperm.xlu0 %1032, %v1031
    %v1034 = vpop.permute.xlu0 %1033
    %vm1035 = vcmp.eq.s32.totalorder %v1030, %v1034
    %v1036 = vsel %vm1035, 1, 0
    %v1037 = vcvt.s32.f32 %v1036
    %vm1038 = vcmask 130048
    %v1040 = vsel %vm1038, %v1037, 0
    %1042 = vmatprep.subr.mxu0 0.0
    %1043 = vmatpush1.msra.mxu0 0.0
    %1044 = vmatprep.subr.mxu0 0.0
    %1045 = vmatpush1.msra.mxu0 0.0
    %1046 = vmatprep.subr.mxu0 0.0
    %1047 = vmatpush1.msra.mxu0 0.0
    %1048 = vmatprep.subr.mxu0 0.0
    %1049 = vmatpush1.msra.mxu0 0.0
    %1050 = vmatprep.subr.mxu0 0.0
    %1051 = vmatpush1.msra.mxu0 0.0
    %1052 = vmatprep.subr.mxu0 0.0
    %1053 = vmatpush1.msra.mxu0 0.0
    %1054 = vmatprep.subr.mxu0 0.0
    %1055 = vmatpush1.msra.mxu0 0.0
    %1056 = vmatprep.subr.mxu0 0.0
    %1057 = vmatpush1.msra.mxu0 0.0
    %1058 = vmatprep.subr.mxu0 0.0
    %1059 = vmatpush1.msra.mxu0 0.0
    %1060 = vmatprep.subr.mxu0 0.0
    %1061 = vmatpush1.msra.mxu0 0.0
    %1062 = vmatprep.subr.mxu0 0.0
    %1063 = vmatpush1.msra.mxu0 0.0
    %1064 = vmatprep.subr.mxu0 0.0
    %1065 = vmatpush1.msra.mxu0 0.0
    %1066 = vmatprep.subr.mxu0 0.0
    %1067 = vmatpush1.msra.mxu0 0.0
    %1068 = vmatprep.subr.mxu0 0.0
    %1069 = vmatpush1.msra.mxu0 0.0
    %1070 = vmatprep.subr.mxu0 0.0
    %1071 = vmatpush1.msra.mxu0 %v1028
    %1072 = vmatprep.subr.mxu0 0.0
    %1073 = vmatpush1.msra.mxu0 %v1027
    %1074 = vmatprep.subr.mxu0 0.0
    %1075 = vmatpush2.msra.mxu0 0.0
    %1076 = vmatprep.subr.mxu0 0.0
    %1077 = vmatpush2.msra.mxu0 0.0
    %1078 = vmatprep.subr.mxu0 0.0
    %1079 = vmatpush2.msra.mxu0 0.0
    %1080 = vmatprep.subr.mxu0 0.0
    %1081 = vmatpush2.msra.mxu0 0.0
    %1082 = vmatprep.subr.mxu0 0.0
    %1083 = vmatpush2.msra.mxu0 0.0
    %1084 = vmatprep.subr.mxu0 0.0
    %1085 = vmatpush2.msra.mxu0 0.0
    %1086 = vmatprep.subr.mxu0 0.0
    %1087 = vmatpush2.msra.mxu0 0.0
    %1088 = vmatprep.subr.mxu0 0.0
    %1089 = vmatpush2.msra.mxu0 0.0
    %1090 = vmatprep.subr.mxu0 0.0
    %1091 = vmatpush2.msra.mxu0 0.0
    %1092 = vmatprep.subr.mxu0 0.0
    %1093 = vmatpush2.msra.mxu0 0.0
    %1094 = vmatprep.subr.mxu0 0.0
    %1095 = vmatpush2.msra.mxu0 0.0
    %1096 = vmatprep.subr.mxu0 0.0
    %1097 = vmatpush2.msra.mxu0 0.0
    %1098 = vmatprep.subr.mxu0 0.0
    %1099 = vmatpush2.msra.mxu0 0.0
    %1100 = vmatprep.subr.mxu0 0.0
    %1101 = vmatpush2.msra.mxu0 0.0
    %1102 = vmatprep.subr.mxu0 0.0
    %1103 = vmatpush2.msra.mxu0 0.0
    %1104 = vmatprep.subr.mxu0 0.0
    %1105 = vmatpush2.msra.mxu0 0.0
    %1106 = vmatprep.mubr.f32.mxu0 0.0
    %1107 = vmatmul.mubr.f32.gmra.mxu0 %v1040
    %v1108 = vpop.f32.mrf.mxu0
    %v1109 = vadd.f32 0.0, %v1108
    %v1110 = vpop.f32.mrf.mxu0
    %1111 = vdwg.mxu0
    %v1112 = vld [vmem:[%s5] sm:$0xff]
    %v1113 = vld [vmem:[%s5 + $0x8] sm:$0xff]
    %v1114 = vld [vmem:[%s5 + $0x10] sm:$0xff]
    %v1115 = vld [vmem:[%s5 + $0x18] sm:$0xff]
    %v1116 = vld [vmem:[%s5 + $0x20] sm:$0xff]
    %v1117 = vld [vmem:[%s5 + $0x28] sm:$0xff]
    %v1118 = vld [vmem:[%s5 + $0x30] sm:$0xff]
    %v1119 = vld [vmem:[%s5 + $0x38] sm:$0xff]
    %v1120 = vld [vmem:[%s6] sm:$0x1]
    %v1122 = vlaneseq
    %v1123 = vshrl.u32 %v1122, 7
    %v1124 = vsub.s32 0, %v1123
    %v1125 = vrot.slane %v1120, %v1124
    %v1128 = vsel %vm905, %v1109, 0
    %1130 = vmatprep.subr.mxu0 0.0
    %1131 = vmatpush1.msra.mxu0 0.0
    %1132 = vmatprep.subr.mxu0 0.0
    %1133 = vmatpush1.msra.mxu0 0.0
    %1134 = vmatprep.subr.mxu0 0.0
    %1135 = vmatpush1.msra.mxu0 0.0
    %1136 = vmatprep.subr.mxu0 0.0
    %1137 = vmatpush1.msra.mxu0 0.0
    %1138 = vmatprep.subr.mxu0 0.0
    %1139 = vmatpush1.msra.mxu0 0.0
    %1140 = vmatprep.subr.mxu0 0.0
    %1141 = vmatpush1.msra.mxu0 0.0
    %1142 = vmatprep.subr.mxu0 0.0
    %1143 = vmatpush1.msra.mxu0 0.0
    %1144 = vmatprep.subr.mxu0 0.0
    %1145 = vmatpush1.msra.mxu0 0.0
    %1146 = vmatprep.subr.mxu0 0.0
    %1147 = vmatpush1.msra.mxu0 %v1119
    %1148 = vmatprep.subr.mxu0 0.0
    %1149 = vmatpush1.msra.mxu0 %v1118
    %1150 = vmatprep.subr.mxu0 0.0
    %1151 = vmatpush1.msra.mxu0 %v1117
    %1152 = vmatprep.subr.mxu0 0.0
    %1153 = vmatpush1.msra.mxu0 %v1116
    %1154 = vmatprep.subr.mxu0 0.0
    %1155 = vmatpush1.msra.mxu0 %v1115
    %1156 = vmatprep.subr.mxu0 0.0
    %1157 = vmatpush1.msra.mxu0 %v1114
    %1158 = vmatprep.subr.mxu0 0.0
    %1159 = vmatpush1.msra.mxu0 %v1113
    %1160 = vmatprep.subr.mxu0 0.0
    %1161 = vmatpush1.msra.mxu0 %v1112
    %1162 = vmatprep.subr.mxu0 0.0
    %1163 = vmatpush2.msra.mxu0 0.0
    %1164 = vmatprep.subr.mxu0 0.0
    %1165 = vmatpush2.msra.mxu0 0.0
    %1166 = vmatprep.subr.mxu0 0.0
    %1167 = vmatpush2.msra.mxu0 0.0
    %1168 = vmatprep.subr.mxu0 0.0
    %1169 = vmatpush2.msra.mxu0 0.0
    %1170 = vmatprep.subr.mxu0 0.0
    %1171 = vmatpush2.msra.mxu0 0.0
    %1172 = vmatprep.subr.mxu0 0.0
    %1173 = vmatpush2.msra.mxu0 0.0
    %1174 = vmatprep.subr.mxu0 0.0
    %1175 = vmatpush2.msra.mxu0 0.0
    %1176 = vmatprep.subr.mxu0 0.0
    %1177 = vmatpush2.msra.mxu0 0.0
    %1178 = vmatprep.subr.mxu0 0.0
    %1179 = vmatpush2.msra.mxu0 0.0
    %1180 = vmatprep.subr.mxu0 0.0
    %1181 = vmatpush2.msra.mxu0 0.0
    %1182 = vmatprep.subr.mxu0 0.0
    %1183 = vmatpush2.msra.mxu0 0.0
    %1184 = vmatprep.subr.mxu0 0.0
    %1185 = vmatpush2.msra.mxu0 0.0
    %1186 = vmatprep.subr.mxu0 0.0
    %1187 = vmatpush2.msra.mxu0 0.0
    %1188 = vmatprep.subr.mxu0 0.0
    %1189 = vmatpush2.msra.mxu0 0.0
    %1190 = vmatprep.subr.mxu0 0.0
    %1191 = vmatpush2.msra.mxu0 0.0
    %1192 = vmatprep.subr.mxu0 0.0
    %1193 = vmatpush2.msra.mxu0 0.0
    %1194 = vmatprep.mubr.f32.mxu0 0.0
    %1195 = vmatmul.mubr.f32.gmra.mxu0 %v1128
    %v1196 = vpop.f32.mrf.mxu0
    %v1197 = vadd.f32 %v1125, %v1196
    %v1198 = vpop.f32.mrf.mxu0
    %1199 = vdwg.mxu0
    %v1200 = vmax.f32 %v1197, 0.0
    %v1201 = vld [vmem:[%s7] sm:$0xff]
    %v1202 = vld [vmem:[%s7 + $0x8] sm:$0xff]
    %v1203 = vld [vmem:[%s7 + $0x10] sm:$0xff]
    %v1204 = vld [vmem:[%s7 + $0x18] sm:$0xff]
    %v1205 = vld [vmem:[%s7 + $0x20] sm:$0xff]
    %v1206 = vld [vmem:[%s7 + $0x28] sm:$0xff]
    %v1207 = vld [vmem:[%s7 + $0x30] sm:$0xff]
    %v1208 = vld [vmem:[%s7 + $0x38] sm:$0xff]
    %v1209 = vld [vmem:[%s7 + $0x40] sm:$0xff]
    %v1210 = vld [vmem:[%s7 + $0x48] sm:$0xff]
    %v1211 = vld [vmem:[%s7 + $0x50] sm:$0xff]
    %v1212 = vld [vmem:[%s7 + $0x58] sm:$0xff]
    %v1213 = vld [vmem:[%s7 + $0x60] sm:$0xff]
    %v1214 = vld [vmem:[%s7 + $0x68] sm:$0xff]
    %v1215 = vld [vmem:[%s7 + $0x70] sm:$0xff]
    %v1216 = vld [vmem:[%s7 + $0x78] sm:$0xff]
    %v1217 = vld [vmem:[%s7 + $0x80] sm:$0xff]
    %v1218 = vld [vmem:[%s7 + $0x88] sm:$0xff]
    %v1219 = vld [vmem:[%s7 + $0x90] sm:$0xff]
    %v1220 = vld [vmem:[%s7 + $0x98] sm:$0xff]
    %v1221 = vld [vmem:[%s7 + $0xa0] sm:$0xff]
    %v1222 = vld [vmem:[%s7 + $0xa8] sm:$0xff]
    %v1223 = vld [vmem:[%s7 + $0xb0] sm:$0xff]
    %v1224 = vld [vmem:[%s7 + $0xb8] sm:$0xff]
    %v1225 = vld [vmem:[%s7 + $0xc0] sm:$0xff]
    %v1226 = vld [vmem:[%s7 + $0xc8] sm:$0xff]
    %v1227 = vld [vmem:[%s7 + $0xd0] sm:$0xff]
    %v1228 = vld [vmem:[%s7 + $0xd8] sm:$0xff]
    %v1229 = vld [vmem:[%s8] sm:$0xff]
    %v1231 = vlaneseq
    %v1232 = vshrl.u32 %v1231, 7
    %v1233 = vsub.s32 0, %v1232
    %v1234 = vrot.slane %v1229, %v1233
    %v1235 = vlaneseq
    %v1236 = vshrl.u32 %v1235, 7
    %v1237 = vsub.s32 1, %v1236
    %v1238 = vrot.slane %v1229, %v1237
    %v1239 = vlaneseq
    %v1240 = vshrl.u32 %v1239, 7
    %v1241 = vsub.s32 2, %v1240
    %v1242 = vrot.slane %v1229, %v1241
    %v1243 = vlaneseq
    %v1244 = vshrl.u32 %v1243, 7
    %v1245 = vsub.s32 3, %v1244
    %v1246 = vrot.slane %v1229, %v1245
    %v1247 = vlaneseq
    %v1248 = vshrl.u32 %v1247, 7
    %v1249 = vsub.s32 4, %v1248
    %v1250 = vrot.slane %v1229, %v1249
    %v1251 = vlaneseq
    %v1252 = vshrl.u32 %v1251, 7
    %v1253 = vsub.s32 5, %v1252
    %v1254 = vrot.slane %v1229, %v1253
    %v1255 = vlaneseq
    %v1256 = vshrl.u32 %v1255, 7
    %v1257 = vsub.s32 6, %v1256
    %v1258 = vrot.slane %v1229, %v1257
    %vm1266 = vcmask 261120
    %v1268 = vsel %vm1266, %v1200, 0
    %1270 = vmatprep.subr.mxu0 0.0
    %1271 = vmatpush1.msra.mxu0 0.0
    %1272 = vmatprep.subr.mxu0 0.0
    %1273 = vmatpush1.msra.mxu0 0.0
    %1274 = vmatprep.subr.mxu0 0.0
    %1275 = vmatpush1.msra.mxu0 0.0
    %1276 = vmatprep.subr.mxu0 0.0
    %1277 = vmatpush1.msra.mxu0 0.0
    %1278 = vmatprep.subr.mxu0 0.0
    %1279 = vmatpush1.msra.mxu0 0.0
    %1280 = vmatprep.subr.mxu0 0.0
    %1281 = vmatpush1.msra.mxu0 0.0
    %1282 = vmatprep.subr.mxu0 0.0
    %1283 = vmatpush1.msra.mxu0 0.0
    %1284 = vmatprep.subr.mxu0 0.0
    %1285 = vmatpush1.msra.mxu0 0.0
    %1286 = vmatprep.subr.mxu0 0.0
    %1287 = vmatpush1.msra.mxu0 0.0
    %1288 = vmatprep.subr.mxu0 0.0
    %1289 = vmatpush1.msra.mxu0 0.0
    %1290 = vmatprep.subr.mxu0 0.0
    %1291 = vmatpush1.msra.mxu0 0.0
    %1292 = vmatprep.subr.mxu0 0.0
    %1293 = vmatpush1.msra.mxu0 0.0
    %1294 = vmatprep.subr.mxu0 %v1223
    %1295 = vmatpush1.msra.mxu0 %v1222
    %1296 = vmatprep.subr.mxu0 %v1216
    %1297 = vmatpush1.msra.mxu0 %v1215
    %1298 = vmatprep.subr.mxu0 %v1209
    %1299 = vmatpush1.msra.mxu0 %v1208
    %1300 = vmatprep.subr.mxu0 %v1202
    %1301 = vmatpush1.msra.mxu0 %v1201
    %1302 = vmatprep.subr.mxu0 0.0
    %1303 = vmatpush2.msra.mxu0 0.0
    %1304 = vmatprep.subr.mxu0 0.0
    %1305 = vmatpush2.msra.mxu0 0.0
    %1306 = vmatprep.subr.mxu0 0.0
    %1307 = vmatpush2.msra.mxu0 0.0
    %1308 = vmatprep.subr.mxu0 0.0
    %1309 = vmatpush2.msra.mxu0 0.0
    %1310 = vmatprep.subr.mxu0 0.0
    %1311 = vmatpush2.msra.mxu0 0.0
    %1312 = vmatprep.subr.mxu0 0.0
    %1313 = vmatpush2.msra.mxu0 0.0
    %1314 = vmatprep.subr.mxu0 0.0
    %1315 = vmatpush2.msra.mxu0 0.0
    %1316 = vmatprep.subr.mxu0 0.0
    %1317 = vmatpush2.msra.mxu0 0.0
    %1318 = vmatprep.subr.mxu0 0.0
    %1319 = vmatpush2.msra.mxu0 0.0
    %1320 = vmatprep.subr.mxu0 0.0
    %1321 = vmatpush2.msra.mxu0 0.0
    %1322 = vmatprep.subr.mxu0 0.0
    %1323 = vmatpush2.msra.mxu0 0.0
    %1324 = vmatprep.subr.mxu0 0.0
    %1325 = vmatpush2.msra.mxu0 0.0
    %1326 = vmatprep.subr.mxu0 0.0
    %1327 = vmatpush2.msra.mxu0 0.0
    %1328 = vmatprep.subr.mxu0 0.0
    %1329 = vmatpush2.msra.mxu0 0.0
    %1330 = vmatprep.subr.mxu0 0.0
    %1331 = vmatpush2.msra.mxu0 0.0
    %1332 = vmatprep.subr.mxu0 0.0
    %1333 = vmatpush2.msra.mxu0 0.0
    %1334 = vmatprep.mubr.f32.mxu0 0.0
    %1335 = vmatmul.mubr.f32.gmra.mxu0 %v1268
    %v1336 = vpop.f32.mrf.mxu0
    %v1337 = vadd.f32 %v1234, %v1336
    %v1338 = vpop.f32.mrf.mxu0
    %v1339 = vadd.f32 %v1238, %v1338
    %1340 = vdwg.mxu0
    %1341 = vmatprep.subr.mxu0 0.0
    %1342 = vmatpush1.msra.mxu0 0.0
    %1343 = vmatprep.subr.mxu0 0.0
    %1344 = vmatpush1.msra.mxu0 0.0
    %1345 = vmatprep.subr.mxu0 0.0
    %1346 = vmatpush1.msra.mxu0 0.0
    %1347 = vmatprep.subr.mxu0 0.0
    %1348 = vmatpush1.msra.mxu0 0.0
    %1349 = vmatprep.subr.mxu0 0.0
    %1350 = vmatpush1.msra.mxu0 0.0
    %1351 = vmatprep.subr.mxu0 0.0
    %1352 = vmatpush1.msra.mxu0 0.0
    %1353 = vmatprep.subr.mxu0 0.0
    %1354 = vmatpush1.msra.mxu0 0.0
    %1355 = vmatprep.subr.mxu0 0.0
    %1356 = vmatpush1.msra.mxu0 0.0
    %1357 = vmatprep.subr.mxu0 0.0
    %1358 = vmatpush1.msra.mxu0 0.0
    %1359 = vmatprep.subr.mxu0 0.0
    %1360 = vmatpush1.msra.mxu0 0.0
    %1361 = vmatprep.subr.mxu0 0.0
    %1362 = vmatpush1.msra.mxu0 0.0
    %1363 = vmatprep.subr.mxu0 0.0
    %1364 = vmatpush1.msra.mxu0 0.0
    %1365 = vmatprep.subr.mxu0 %v1225
    %1366 = vmatpush1.msra.mxu0 %v1224
    %1367 = vmatprep.subr.mxu0 %v1218
    %1368 = vmatpush1.msra.mxu0 %v1217
    %1369 = vmatprep.subr.mxu0 %v1211
    %1370 = vmatpush1.msra.mxu0 %v1210
    %1371 = vmatprep.subr.mxu0 %v1204
    %1372 = vmatpush1.msra.mxu0 %v1203
    %1373 = vmatprep.subr.mxu0 0.0
    %1374 = vmatpush2.msra.mxu0 0.0
    %1375 = vmatprep.subr.mxu0 0.0
    %1376 = vmatpush2.msra.mxu0 0.0
    %1377 = vmatprep.subr.mxu0 0.0
    %1378 = vmatpush2.msra.mxu0 0.0
    %1379 = vmatprep.subr.mxu0 0.0
    %1380 = vmatpush2.msra.mxu0 0.0
    %1381 = vmatprep.subr.mxu0 0.0
    %1382 = vmatpush2.msra.mxu0 0.0
    %1383 = vmatprep.subr.mxu0 0.0
    %1384 = vmatpush2.msra.mxu0 0.0
    %1385 = vmatprep.subr.mxu0 0.0
    %1386 = vmatpush2.msra.mxu0 0.0
    %1387 = vmatprep.subr.mxu0 0.0
    %1388 = vmatpush2.msra.mxu0 0.0
    %1389 = vmatprep.subr.mxu0 0.0
    %1390 = vmatpush2.msra.mxu0 0.0
    %1391 = vmatprep.subr.mxu0 0.0
    %1392 = vmatpush2.msra.mxu0 0.0
    %1393 = vmatprep.subr.mxu0 0.0
    %1394 = vmatpush2.msra.mxu0 0.0
    %1395 = vmatprep.subr.mxu0 0.0
    %1396 = vmatpush2.msra.mxu0 0.0
    %1397 = vmatprep.subr.mxu0 0.0
    %1398 = vmatpush2.msra.mxu0 0.0
    %1399 = vmatprep.subr.mxu0 0.0
    %1400 = vmatpush2.msra.mxu0 0.0
    %1401 = vmatprep.subr.mxu0 0.0
    %1402 = vmatpush2.msra.mxu0 0.0
    %1403 = vmatprep.subr.mxu0 0.0
    %1404 = vmatpush2.msra.mxu0 0.0
    %1405 = vmatprep.mubr.f32.mxu0 0.0
    %1406 = vmatmul.mubr.f32.gmra.mxu0 %v1268
    %v1407 = vpop.f32.mrf.mxu0
    %v1408 = vadd.f32 %v1242, %v1407
    %v1409 = vpop.f32.mrf.mxu0
    %v1410 = vadd.f32 %v1246, %v1409
    %1411 = vdwg.mxu0
    %1412 = vmatprep.subr.mxu0 0.0
    %1413 = vmatpush1.msra.mxu0 0.0
    %1414 = vmatprep.subr.mxu0 0.0
    %1415 = vmatpush1.msra.mxu0 0.0
    %1416 = vmatprep.subr.mxu0 0.0
    %1417 = vmatpush1.msra.mxu0 0.0
    %1418 = vmatprep.subr.mxu0 0.0
    %1419 = vmatpush1.msra.mxu0 0.0
    %1420 = vmatprep.subr.mxu0 0.0
    %1421 = vmatpush1.msra.mxu0 0.0
    %1422 = vmatprep.subr.mxu0 0.0
    %1423 = vmatpush1.msra.mxu0 0.0
    %1424 = vmatprep.subr.mxu0 0.0
    %1425 = vmatpush1.msra.mxu0 0.0
    %1426 = vmatprep.subr.mxu0 0.0
    %1427 = vmatpush1.msra.mxu0 0.0
    %1428 = vmatprep.subr.mxu0 0.0
    %1429 = vmatpush1.msra.mxu0 0.0
    %1430 = vmatprep.subr.mxu0 0.0
    %1431 = vmatpush1.msra.mxu0 0.0
    %1432 = vmatprep.subr.mxu0 0.0
    %1433 = vmatpush1.msra.mxu0 0.0
    %1434 = vmatprep.subr.mxu0 0.0
    %1435 = vmatpush1.msra.mxu0 0.0
    %1436 = vmatprep.subr.mxu0 %v1227
    %1437 = vmatpush1.msra.mxu0 %v1226
    %1438 = vmatprep.subr.mxu0 %v1220
    %1439 = vmatpush1.msra.mxu0 %v1219
    %1440 = vmatprep.subr.mxu0 %v1213
    %1441 = vmatpush1.msra.mxu0 %v1212
    %1442 = vmatprep.subr.mxu0 %v1206
    %1443 = vmatpush1.msra.mxu0 %v1205
    %1444 = vmatprep.subr.mxu0 0.0
    %1445 = vmatpush2.msra.mxu0 0.0
    %1446 = vmatprep.subr.mxu0 0.0
    %1447 = vmatpush2.msra.mxu0 0.0
    %1448 = vmatprep.subr.mxu0 0.0
    %1449 = vmatpush2.msra.mxu0 0.0
    %1450 = vmatprep.subr.mxu0 0.0
    %1451 = vmatpush2.msra.mxu0 0.0
    %1452 = vmatprep.subr.mxu0 0.0
    %1453 = vmatpush2.msra.mxu0 0.0
    %1454 = vmatprep.subr.mxu0 0.0
    %1455 = vmatpush2.msra.mxu0 0.0
    %1456 = vmatprep.subr.mxu0 0.0
    %1457 = vmatpush2.msra.mxu0 0.0
    %1458 = vmatprep.subr.mxu0 0.0
    %1459 = vmatpush2.msra.mxu0 0.0
    %1460 = vmatprep.subr.mxu0 0.0
    %1461 = vmatpush2.msra.mxu0 0.0
    %1462 = vmatprep.subr.mxu0 0.0
    %1463 = vmatpush2.msra.mxu0 0.0
    %1464 = vmatprep.subr.mxu0 0.0
    %1465 = vmatpush2.msra.mxu0 0.0
    %1466 = vmatprep.subr.mxu0 0.0
    %1467 = vmatpush2.msra.mxu0 0.0
    %1468 = vmatprep.subr.mxu0 0.0
    %1469 = vmatpush2.msra.mxu0 0.0
    %1470 = vmatprep.subr.mxu0 0.0
    %1471 = vmatpush2.msra.mxu0 0.0
    %1472 = vmatprep.subr.mxu0 0.0
    %1473 = vmatpush2.msra.mxu0 0.0
    %1474 = vmatprep.subr.mxu0 0.0
    %1475 = vmatpush2.msra.mxu0 0.0
    %1476 = vmatprep.mubr.f32.mxu0 0.0
    %1477 = vmatmul.mubr.f32.gmra.mxu0 %v1268
    %v1478 = vpop.f32.mrf.mxu0
    %v1479 = vadd.f32 %v1250, %v1478
    %v1480 = vpop.f32.mrf.mxu0
    %v1481 = vadd.f32 %v1254, %v1480
    %1482 = vdwg.mxu0
    %1483 = vmatprep.subr.mxu0 0.0
    %1484 = vmatpush1.msra.mxu0 0.0
    %1485 = vmatprep.subr.mxu0 0.0
    %1486 = vmatpush1.msra.mxu0 0.0
    %1487 = vmatprep.subr.mxu0 0.0
    %1488 = vmatpush1.msra.mxu0 0.0
    %1489 = vmatprep.subr.mxu0 0.0
    %1490 = vmatpush1.msra.mxu0 0.0
    %1491 = vmatprep.subr.mxu0 0.0
    %1492 = vmatpush1.msra.mxu0 0.0
    %1493 = vmatprep.subr.mxu0 0.0
    %1494 = vmatpush1.msra.mxu0 0.0
    %1495 = vmatprep.subr.mxu0 0.0
    %1496 = vmatpush1.msra.mxu0 0.0
    %1497 = vmatprep.subr.mxu0 0.0
    %1498 = vmatpush1.msra.mxu0 0.0
    %1499 = vmatprep.subr.mxu0 0.0
    %1500 = vmatpush1.msra.mxu0 0.0
    %1501 = vmatprep.subr.mxu0 0.0
    %1502 = vmatpush1.msra.mxu0 0.0
    %1503 = vmatprep.subr.mxu0 0.0
    %1504 = vmatpush1.msra.mxu0 0.0
    %1505 = vmatprep.subr.mxu0 0.0
    %1506 = vmatpush1.msra.mxu0 0.0
    %1507 = vmatprep.subr.mxu0 0.0
    %1508 = vmatpush1.msra.mxu0 %v1228
    %1509 = vmatprep.subr.mxu0 0.0
    %1510 = vmatpush1.msra.mxu0 %v1221
    %1511 = vmatprep.subr.mxu0 0.0
    %1512 = vmatpush1.msra.mxu0 %v1214
    %1513 = vmatprep.subr.mxu0 0.0
    %1514 = vmatpush1.msra.mxu0 %v1207
    %1515 = vmatprep.subr.mxu0 0.0
    %1516 = vmatpush2.msra.mxu0 0.0
    %1517 = vmatprep.subr.mxu0 0.0
    %1518 = vmatpush2.msra.mxu0 0.0
    %1519 = vmatprep.subr.mxu0 0.0
    %1520 = vmatpush2.msra.mxu0 0.0
    %1521 = vmatprep.subr.mxu0 0.0
    %1522 = vmatpush2.msra.mxu0 0.0
    %1523 = vmatprep.subr.mxu0 0.0
    %1524 = vmatpush2.msra.mxu0 0.0
    %1525 = vmatprep.subr.mxu0 0.0
    %1526 = vmatpush2.msra.mxu0 0.0
    %1527 = vmatprep.subr.mxu0 0.0
    %1528 = vmatpush2.msra.mxu0 0.0
    %1529 = vmatprep.subr.mxu0 0.0
    %1530 = vmatpush2.msra.mxu0 0.0
    %1531 = vmatprep.subr.mxu0 0.0
    %1532 = vmatpush2.msra.mxu0 0.0
    %1533 = vmatprep.subr.mxu0 0.0
    %1534 = vmatpush2.msra.mxu0 0.0
    %1535 = vmatprep.subr.mxu0 0.0
    %1536 = vmatpush2.msra.mxu0 0.0
    %1537 = vmatprep.subr.mxu0 0.0
    %1538 = vmatpush2.msra.mxu0 0.0
    %1539 = vmatprep.subr.mxu0 0.0
    %1540 = vmatpush2.msra.mxu0 0.0
    %1541 = vmatprep.subr.mxu0 0.0
    %1542 = vmatpush2.msra.mxu0 0.0
    %1543 = vmatprep.subr.mxu0 0.0
    %1544 = vmatpush2.msra.mxu0 0.0
    %1545 = vmatprep.subr.mxu0 0.0
    %1546 = vmatpush2.msra.mxu0 0.0
    %1547 = vmatprep.mubr.f32.mxu0 0.0
    %1548 = vmatmul.mubr.f32.gmra.mxu0 %v1268
    %v1549 = vpop.f32.mrf.mxu0
    %v1550 = vadd.f32 %v1258, %v1549
    %v1551 = vpop.f32.mrf.mxu0
    %1552 = vdwg.mxu0
    %v1553 = vadd.s32 %v1030, 128
    %v1554 = vadd.s32 %v1030, 256
    %v1555 = vadd.s32 %v1030, 384
    %v1556 = vadd.s32 %v1030, 512
    %v1557 = vadd.s32 %v1030, 640
    %v1558 = vadd.s32 %v1030, 768
    %v1559 = vmax.f32 %v1337, %v1479
    %v1560 = vmax.f32 %v1339, %v1481
    %v1561 = vmax.f32 %v1408, %v1550
    %v1562 = vmax.f32 %v1559, %v1560
    %v1563 = vmax.f32 %v1561, %v1410
    %v1564 = vmax.f32 %v1562, %v1563
    %1565 = vmax.xlane.f32.xlu0 %v1564
    %v1566 = vpop.xlane.xlu0 %1565
    %vm1567 = vcmp.eq.f32.partialorder %v1337, %v1566
    %vm1568 = vcmp.eq.f32.partialorder %v1339, %v1566
    %vm1569 = vcmp.eq.f32.partialorder %v1408, %v1566
    %vm1570 = vcmp.eq.f32.partialorder %v1410, %v1566
    %vm1571 = vcmp.eq.f32.partialorder %v1479, %v1566
    %vm1572 = vcmp.eq.f32.partialorder %v1481, %v1566
    %vm1573 = vcmp.eq.f32.partialorder %v1550, %v1566
    %v1574 = vsel %vm1567, %v1030, 1073741824
    %v1575 = vsel %vm1568, %v1553, 1073741824
    %v1576 = vsel %vm1569, %v1554, 1073741824
    %v1577 = vsel %vm1570, %v1555, 1073741824
    %v1578 = vsel %vm1571, %v1556, 1073741824
    %v1579 = vsel %vm1572, %v1557, 1073741824
    %v1580 = vsel %vm1573, %v1558, 1073741824
    %vm1581 = vcmp.lt.s32.totalorder %v1574, %v1578
    %v1582 = vsel %vm1581, %v1574, %v1578
    %vm1583 = vcmp.lt.s32.totalorder %v1575, %v1579
    %v1584 = vsel %vm1583, %v1575, %v1579
    %vm1585 = vcmp.lt.s32.totalorder %v1576, %v1580
    %v1586 = vsel %vm1585, %v1576, %v1580
    %vm1587 = vcmp.lt.s32.totalorder %v1582, %v1584
    %v1588 = vsel %vm1587, %v1582, %v1584
    %vm1589 = vcmp.lt.s32.totalorder %v1586, %v1577
    %v1590 = vsel %vm1589, %v1586, %v1577
    %vm1591 = vcmp.lt.s32.totalorder %v1588, %v1590
    %v1592 = vsel %vm1591, %v1588, %v1590
    %v1593 = vand.u32 %v1592, 65535
    %v1594 = vshra.s32 %v1592, 16
    %v1595 = vcvt.s32.f32 %v1593
    %v1596 = vcvt.s32.f32 %v1594
    %1597 = vmin.xlane.f32.xlu0 %v1596
    %v1598 = vpop.xlane.xlu0 %1597
    %vm1599 = vcmp.eq.f32.partialorder %v1596, %v1598
    %v1600 = vsel %vm1599, %v1595, inf
    %1601 = vmin.xlane.f32.xlu0 %v1600
    %v1602 = vpop.xlane.xlu0 %1601
    %v1603 = vcvt.f32.s32 %v1602
    %v1604 = vcvt.f32.s32 %v1598
    %v1605 = vshll.u32 %v1604, 16
    %v1606 = vadd.s32 %v1605, %v1603
    %v1607 = vlaneseq
    %v1608 = vshrl.u32 %v1607, 7
    %vm1609 = vcmp.eq.s32.totalorder %v1608, %v1030
    %v1610 = vsel %vm1609, %v1606, 0
    %vm1611 = vcmask 64512
    %v1612 = vsel %vm1611, %v1610, 0
    %v1613 = vrot.slane %v1612, 4
    %v1614 = vadd.s32 %v1612, %v1613
    %v1615 = vrot.slane %v1614, 2
    %v1616 = vadd.s32 %v1614, %v1615
    %v1617 = vrot.slane %v1616, 1
    %v1618 = vadd.s32 %v1616, %v1617
    %vm1619 = vcmask 57344
    %1620 = vst.msk [vmem:[#allocation7] sm:$0x1] %vm1619, %v1618
    // Predicated region
    $region518: #{tpu_custom_call.1} parent=1 // pred_check
      _
    $region519: #{tpu_custom_call.1} parent=1 // pred_check_branch
      %1622 = sbr.rel (0) target = $region521
    $region520: #{tpu_custom_call.1} parent=1 // pred_region
      %s1624 = ssub.s32 16, 16
      %1625 = vsyncadd [#allocation5], %s1624
      %s1627 = sshll.u32 [#allocation7], 4
      %s1628 = int_to_ptr.vmem [resolvable:$true] %s1627
      %1630 = dma.vmem_to_hbm [thread:$0]  %s1628, 16, %s9, [#allocation5]
    $region521: #{tpu_custom_call.1} parent=1 // pred_fallthru
      _
    // Predicated region
    $region522: #{tpu_custom_call.1} parent=1 // pred_check
      _
    $region523: #{tpu_custom_call.1} parent=1 // pred_check_branch
      %1632 = sbr.rel (0) target = $region525
    $region524: #{tpu_custom_call.1} parent=1 // pred_region
      %1633 = dma.done [#allocation5], 16
    $region525: #{tpu_custom_call.1} parent=1 // pred_fallthru
      _
    %1634 = vsyncpa [#allocation5], 1
    %1635 = vsyncpa [#allocation6], 1
  %1636 = vsyncmov [#allocation3]
  %s1637 = vpop.sfrf %1636
  %p1638 = scmp.eq.s32.totalorder %s1637, 0
  %p1639 = pneg %p1638
  %1641 = shalt.err (%p1639)
  %s1642 = scalar_lea.sflag [#allocation3], 1
  %1643 = vsyncmov %s1642
  %s1644 = vpop.sfrf %1643
  %p1645 = scmp.eq.s32.totalorder %s1644, 0
  %p1646 = pneg %p1645
  %1648 = shalt.err (%p1646)
  %s1649 = scalar_lea.sflag [#allocation3], 2
  %1650 = vsyncmov %s1649
  %s1651 = vpop.sfrf %1650
  %p1652 = scmp.eq.s32.totalorder %s1651, 0
  %p1653 = pneg %p1652
  %1655 = shalt.err (%p1653)
  %s1656 = scalar_lea.sflag [#allocation3], 3
  %1657 = vsyncmov %s1656
  %s1658 = vpop.sfrf %1657
  %p1659 = scmp.eq.s32.totalorder %s1658, 0
  %p1660 = pneg %p1659
  %1662 = shalt.err (%p1660)
  %s1663 = scalar_lea.sflag [#allocation3], 4
  %1664 = vsyncmov %s1663
  %s1665 = vpop.sfrf %1664
  %p1666 = scmp.eq.s32.totalorder %s1665, 0
  %p1667 = pneg %p1666
  %1669 = shalt.err (%p1667)
  %s1670 = scalar_lea.sflag [#allocation3], 5
  %1671 = vsyncmov %s1670
  %s1672 = vpop.sfrf %1671
  %p1673 = scmp.eq.s32.totalorder %s1672, 0
  %p1674 = pneg %p1673
  %1676 = shalt.err (%p1674)
  %s1677 = scalar_lea.sflag [#allocation3], 6
  %1678 = vsyncmov %s1677
  %s1679 = vpop.sfrf %1678
  %p1680 = scmp.eq.s32.totalorder %s1679, 0
  %p1681 = pneg %p1680
  %1683 = shalt.err (%p1681)
  %s1684 = scalar_lea.sflag [#allocation3], 7
  %1685 = vsyncmov %s1684
  %s1686 = vpop.sfrf %1685
  %p1687 = scmp.eq.s32.totalorder %s1686, 0
  %p1688 = pneg %p1687
  %1690 = shalt.err (%p1688)
  %s1691 = scalar_lea.sflag [#allocation3], 8
  %1692 = vsyncmov %s1691
  %s1693 = vpop.sfrf %1692
  %p1694 = scmp.eq.s32.totalorder %s1693, 0
  %p1695 = pneg %p1694
  %1697 = shalt.err (%p1695)
  %s1698 = scalar_lea.sflag [#allocation3], 9
  %1699 = vsyncmov %s1698
  %s1700 = vpop.sfrf %1699
  %p1701 = scmp.eq.s32.totalorder %s1700, 0
  %p1702 = pneg %p1701
  %1704 = shalt.err (%p1702)
  %s1705 = scalar_lea.sflag [#allocation3], 10
  %1706 = vsyncmov %s1705
  %s1707 = vpop.sfrf %1706
  %p1708 = scmp.eq.s32.totalorder %s1707, 0
  %p1709 = pneg %p1708
  %1711 = shalt.err (%p1709)
  %s1712 = scalar_lea.sflag [#allocation3], 11
  %1713 = vsyncmov %s1712
  %s1714 = vpop.sfrf %1713
  %p1715 = scmp.eq.s32.totalorder %s1714, 0
  %p1716 = pneg %p1715
  %1718 = shalt.err (%p1716)
  %s1719 = scalar_lea.sflag [#allocation3], 12
  %1720 = vsyncmov %s1719
  %s1721 = vpop.sfrf %1720
  %p1722 = scmp.eq.s32.totalorder %s1721, 0
  %p1723 = pneg %p1722
  %1725 = shalt.err (%p1723)
  %s1726 = scalar_lea.sflag [#allocation3], 13
  %1727 = vsyncmov %s1726
  %s1728 = vpop.sfrf %1727
  %p1729 = scmp.eq.s32.totalorder %s1728, 0
  %p1730 = pneg %p1729
  %1732 = shalt.err (%p1730)
  %s1733 = scalar_lea.sflag [#allocation3], 14
  %1734 = vsyncmov %s1733
  %s1735 = vpop.sfrf %1734
  %p1736 = scmp.eq.s32.totalorder %s1735, 0
  %p1737 = pneg %p1736
  %1739 = shalt.err (%p1737)
  %s1740 = scalar_lea.sflag [#allocation3], 15
  %1741 = vsyncmov %s1740
  %s1742 = vpop.sfrf %1741
  %p1743 = scmp.eq.s32.totalorder %s1742, 0
  %p1744 = pneg %p1743
  %1746 = shalt.err (%p1744)

</llo_original>
